<compile_context>
chip_gen: v7x
topology: tpu7x:2x2x1
jax: 0.10.0
libtpu: 0.0.40
codegen_flags: <defaults>
</compile_context>

<pallas_src>
import math
import functools

import jax
import jax.numpy as jnp
from jax.experimental import pallas as pl
from jax.experimental.pallas import tpu as pltpu


def _round_up(v, m):
    return ((v + m - 1) // m) * m


# ----------------------------------------------------------------------------------
# Fused kernel: class-tiled AAM-softmax (online LSE, deferred margin) + angleproto
# ----------------------------------------------------------------------------------
def _loss_kernel(xe_ref, w_ref, lbl_ref, xpn_ref, xan_ref, apwb_ref,   # inputs
                 out_ref, ap_ref,                                      # outputs
                 m_sc, l_sc, t_sc,                                     # scratch
                 *, n_rows, n_classes, n_spk, tm, tc,
                 cos_m, sin_m, th, mm, scale, easy_margin,
                 w_transposed, needs_pad_mask):
    i = pl.program_id(0)          # row tile   ("parallel": megacore-shardable)
    k = pl.program_id(1)          # class tile ("arbitrary": online LSE reduction)
    nk = pl.num_programs(1)

    @pl.when(k == 0)
    def _init():
        m_sc[...] = jnp.full((tm, 1), -1e30, jnp.float32)   # running max (non-target)
        l_sc[...] = jnp.zeros((tm, 1), jnp.float32)         # running sum-exp (non-target)
        t_sc[...] = jnp.zeros((tm, 1), jnp.float32)         # target logit  s*cos_y

    # logits = s * <x_norm, w_norm>  (scale already folded into bf16 weight), f32 accumulate.
    if w_transposed:   # weight tile is (D, tc)
        logits = jnp.dot(xe_ref[...], w_ref[...], preferred_element_type=jnp.float32)
    else:              # weight tile is (tc, D); contract on D (flash-attn style)
        logits = jax.lax.dot_general(xe_ref[...], w_ref[...],
                                     (((1,), (1,)), ((), ())),
                                     preferred_element_type=jnp.float32)

    col = jax.lax.broadcasted_iota(jnp.int32, (tm, tc), 1)
    is_tgt = col == (lbl_ref[...] - k * tc)

    # Target logit accumulated separately; excluded from the running max / sum below.
    t_sc[...] = t_sc[...] + jnp.sum(jnp.where(is_tgt, logits, 0.0), axis=-1, keepdims=True)

    masked = jnp.where(is_tgt, -1e30, logits)
    if needs_pad_mask:
        # Only the tail tile actually has padded classes; this (1, tc) row + one add is the
        # cheapest robust way to kill them (skipped entirely when C % tc == 0).
        lane = jax.lax.broadcasted_iota(jnp.int32, (1, tc), 1)
        pad_row = jnp.where(lane < (n_classes - k * tc), 0.0, -1e9)
        masked = masked + pad_row

    # Online log-sum-exp over non-target classes.
    m_prev = m_sc[...]
    m_new = jnp.maximum(m_prev, jnp.max(masked, axis=-1, keepdims=True))
    l_sc[...] = (l_sc[...] * jnp.exp(m_prev - m_new)
                 + jnp.sum(jnp.exp(masked - m_new), axis=-1, keepdims=True))
    m_sc[...] = m_new

    @pl.when(k == nk - 1)
    def _finalize():
        t = t_sc[...]                       # s * cos_y
        m_oth = m_sc[...]                   # max over non-target logits
        cos_y = t * (1.0 / scale)
        sin_y = jnp.sqrt(jnp.clip(1.0 - cos_y * cos_y, 0.0, 1.0))
        phi = cos_y * cos_m - sin_y * sin_m
        if easy_margin:
            phi = jnp.where(cos_y > 0.0, phi, cos_y)
        else:
            phi = jnp.where(cos_y - th > 0.0, phi, cos_y - mm)
        ty = phi * scale                    # margined target logit

        # Exact LSE over {non-target logits} U {ty}; both exp args <= 0 -> no cancellation.
        m_fin = jnp.maximum(m_oth, ty)
        lse = m_fin + jnp.log(l_sc[...] * jnp.exp(m_oth - m_fin) + jnp.exp(ty - m_fin))

        row = i * tm + jax.lax.broadcasted_iota(jnp.int32, (tm, 1), 0)
        valid = row < n_rows
        out_ref[:, 0:1] = jnp.where(valid, lse - ty, 0.0)                       # CE per row
        out_ref[:, 1:2] = jnp.where(valid & (ty >= m_oth), 1.0, 0.0)            # top-1 correct
        ap_ref[...] = jnp.zeros((8, 128), jnp.float32)

    @pl.when((k == nk - 1) & (i == 0))
    def _angleproto():
        # Flipped pairing is the transpose of the first cosine matrix -> one NxN matmul.
        np_ = xpn_ref.shape[0]
        cos = jax.lax.dot_general(xpn_ref[...], xan_ref[...],
                                  (((1,), (1,)), ((), ())),
                                  preferred_element_type=jnp.float32)           # [Np, Np]
        wb = apwb_ref[...]
        # NOTE: torch.clamp(self.w, 1e-6) in the reference is NOT in-place -> no effect.
        sim = cos * wb[0:1, 0:1] + wb[0:1, 1:2]

        ri = jax.lax.broadcasted_iota(jnp.int32, (np_, np_), 0)
        ci = jax.lax.broadcasted_iota(jnp.int32, (np_, np_), 1)
        vr = ri < n_spk
        vc = ci < n_spk
        sim_r = jnp.where(vc, sim, -1e30)       # mask padded columns (row-wise CE)
        sim_c = jnp.where(vr, sim, -1e30)       # mask padded rows    (col-wise CE)

        rmax = jnp.max(sim_r, axis=1, keepdims=True)
        rlse = rmax + jnp.log(jnp.sum(jnp.exp(sim_r - rmax), axis=1, keepdims=True))
        sum_rlse = jnp.sum(jnp.where(ri[:, 0:1] < n_spk, rlse, 0.0), axis=0, keepdims=True)

        cmax = jnp.max(sim_c, axis=0, keepdims=True)
        clse = cmax + jnp.log(jnp.sum(jnp.exp(sim_c - cmax), axis=0, keepdims=True))
        sum_clse = jnp.sum(jnp.where(ci[0:1, :] < n_spk, clse, 0.0), axis=1, keepdims=True)

        diag = jnp.sum(jnp.where((ri == ci) & vr & vc, sim, 0.0), axis=1, keepdims=True)
        sum_diag = jnp.sum(diag, axis=0, keepdims=True)

        loss_p = 0.5 * ((sum_rlse - sum_diag) + (sum_clse - sum_diag)) / n_spk   # (1,1)
        ap_ref[...] = jnp.broadcast_to(loss_p, (8, 128))


# ----------------------------------------------------------------------------------
# Wrapper
# ----------------------------------------------------------------------------------
def combined_loss(x, label, aam_weight, ap_w, ap_b, *,
                  margin=0.2, scale=30.0, easy_margin=False,
                  row_tile=None, class_tile=None):
    """x: [N, 2, D] float32, label: [N] int, aam_weight: [C, D] float32."""
    x = jnp.asarray(x, jnp.float32)
    N, two, D = x.shape
    assert two == 2
    C = aam_weight.shape[0]
    R = 2 * N

    # ---- normalize embeddings once (reused by both losses) ----
    inv = jax.lax.rsqrt(jnp.maximum(jnp.sum(x * x, axis=-1, keepdims=True), 1e-24))
    xn = x * inv                                           # [N, 2, D] f32 unit rows
    xe = xn.reshape(R, D).astype(jnp.bfloat16)             # torch x.reshape(-1, D) order
    lbl = jnp.repeat(jnp.asarray(label, jnp.int32), 2)     # label.repeat_interleave(2)

    # ---- normalize AAM weight once, fold the softmax scale s into it ----
    w32 = jnp.asarray(aam_weight, jnp.float32)
    winv = jax.lax.rsqrt(jnp.maximum(jnp.sum(w32 * w32, axis=-1, keepdims=True), 1e-24))
    wn = (w32 * winv) * float(scale)                       # [C, D]

    # ---- tiling (multiples of (8/16, 128); bounded for v7x's 64 MiB VMEM) ----
    TM_MAX = 512 if row_tile is None else int(row_tile)
    TC_MAX = 2048 if class_tile is None else int(class_tile)
    # >= 2 row tiles whenever possible so the "parallel" axis can use both v7x TensorCores.
    tm = min(TM_MAX, _round_up(max(pl.cdiv(R, 2), 8), 16))
    R_pad = _round_up(R, tm)
    num_rt = R_pad // tm

    C_pad = _round_up(C, 128)
    if C_pad <= TC_MAX:
        tc = C_pad
    else:
        tc = TC_MAX
        C_pad = _round_up(C, tc)
    num_kt = C_pad // tc
    needs_pad_mask = C_pad > C

    # Weight layout: keep (C, D) when D is lane-dense (no wrapper transpose pass over W);
    # transpose to (D, C) for small D so the streamed tile's lane dim stays dense.
    w_transposed = D < 128
    if w_transposed:
        w_in = jnp.pad(wn, ((0, C_pad - C), (0, 0))).T.astype(jnp.bfloat16)    # (D, C_pad)
        w_spec = pl.BlockSpec((D, tc), lambda i, k: (0, k))
    else:
        w_in = jnp.pad(wn, ((0, C_pad - C), (0, 0))).astype(jnp.bfloat16)      # (C_pad, D)
        w_spec = pl.BlockSpec((tc, D), lambda i, k: (k, 0))

    xe_p = jnp.pad(xe, ((0, R_pad - R), (0, 0)))
    lbl_p = jnp.pad(lbl, (0, R_pad - R)).reshape(R_pad, 1)

    # ---- angular-prototypical operands (normalized, f32, tiny) ----
    N_pad = _round_up(N, 8)
    xpn = jnp.pad(xn[:, 0, :], ((0, N_pad - N), (0, 0)))   # positives
    xan = jnp.pad(xn[:, 1, :], ((0, N_pad - N), (0, 0)))   # anchors
    apwb = jnp.zeros((1, 128), jnp.float32).at[0, 0].set(ap_w).at[0, 1].set(ap_b)

    kern = functools.partial(
        _loss_kernel,
        n_rows=R, n_classes=C, n_spk=N, tm=tm, tc=tc,
        cos_m=math.cos(margin), sin_m=math.sin(margin),
        th=math.cos(math.pi - margin), mm=math.sin(math.pi - margin) * margin,
        scale=float(scale), easy_margin=bool(easy_margin),
        w_transposed=w_transposed, needs_pad_mask=needs_pad_mask)

    out, ap_out = pl.pallas_call(
        kern,
        grid=(num_rt, num_kt),
        in_specs=[
            pl.BlockSpec((tm, D), lambda i, k: (i, 0)),       # normalized bf16 embeddings
            w_spec,                                           # normalized+scaled bf16 weight
            pl.BlockSpec((tm, 1), lambda i, k: (i, 0)),       # labels
            pl.BlockSpec((N_pad, D), lambda i, k: (0, 0)),    # normalized positives (f32)
            pl.BlockSpec((N_pad, D), lambda i, k: (0, 0)),    # normalized anchors   (f32)
            pl.BlockSpec((1, 128), lambda i, k: (0, 0)),      # angleproto (w, b)
        ],
        out_specs=(
            pl.BlockSpec((tm, 2), lambda i, k: (i, 0)),       # [ce, top1-correct] per row
            pl.BlockSpec((8, 128), lambda i, k: (i, 0)),      # angleproto loss (row tile 0)
        ),
        out_shape=(jax.ShapeDtypeStruct((R_pad, 2), jnp.float32),
                   jax.ShapeDtypeStruct((num_rt * 8, 128), jnp.float32)),
        scratch_shapes=[
            pltpu.VMEM((tm, 1), jnp.float32),                 # running max (non-target)
            pltpu.VMEM((tm, 1), jnp.float32),                 # running sum-exp (non-target)
            pltpu.VMEM((tm, 1), jnp.float32),                 # target logit
        ],
        compiler_params=pltpu.CompilerParams(
            dimension_semantics=("parallel", "arbitrary"),
            vmem_limit_bytes=32 * 1024 * 1024),
        cost_estimate=pl.CostEstimate(
            flops=int(2 * R_pad * C_pad * D + 6 * R_pad * C_pad + 2 * N_pad * N_pad * D),
            transcendentals=int(R_pad * C_pad + 2 * N_pad * N_pad),
            bytes_accessed=int(num_rt * D * C_pad * 2        # W is re-streamed per row tile
                               + R_pad * D * 2 + R_pad * 4 + R_pad * 2 * 4
                               + 2 * N_pad * D * 4 + num_rt * 8 * 128 * 4)),
    )(xe_p, w_in, lbl_p, xpn, xan, apwb)

    loss_s = jnp.sum(out[:, 0]) / R                        # mean cross-entropy (AAM)
    prec1 = 100.0 * jnp.sum(out[:, 1]) / R                 # top-1 accuracy (%)
    loss_p = ap_out[0, 0]                                  # angular-prototypical loss
    return loss_s + loss_p, prec1


# ----------------------------------------------------------------------------------
# Pure-JAX reference (mirrors the PyTorch module) for validation
# ----------------------------------------------------------------------------------
def _reference(x, label, W, ap_w, ap_b, margin, scale, easy_margin=False):
    x = jnp.asarray(x, jnp.float32)
    N, _, D = x.shape
    C = W.shape[0]
    xf = x.reshape(-1, D)
    lab = jnp.repeat(jnp.asarray(label, jnp.int32), 2)
    xnorm = xf / jnp.linalg.norm(xf, axis=-1, keepdims=True)
    wnorm = W / jnp.linalg.norm(W, axis=-1, keepdims=True)
    cosine = xnorm @ wnorm.T
    sine = jnp.sqrt(jnp.clip(1.0 - cosine * cosine, 0.0, 1.0))
    cos_m, sin_m = math.cos(margin), math.sin(margin)
    th = math.cos(math.pi - margin)
    mm = math.sin(math.pi - margin) * margin
    phi = cosine * cos_m - sine * sin_m
    phi = (jnp.where(cosine > 0, phi, cosine) if easy_margin
           else jnp.where(cosine - th > 0, phi, cosine - mm))
    one_hot = jax.nn.one_hot(lab, C, dtype=jnp.float32)
    out = (one_hot * phi + (1.0 - one_hot) * cosine) * scale
    logp = jax.nn.log_softmax(out, axis=-1)
    ce = -jnp.mean(jnp.take_along_axis(logp, lab[:, None], axis=1))
    prec1 = 100.0 * jnp.mean((jnp.argmax(out, axis=-1) == lab).astype(jnp.float32))
    xp, xa = x[:, 0, :], x[:, 1, :]
    pn = xp / jnp.linalg.norm(xp, axis=-1, keepdims=True)
    an = xa / jnp.linalg.norm(xa, axis=-1, keepdims=True)
    sim = pn @ an.T * ap_w + ap_b
    idx = jnp.arange(N)
    ce1 = -jnp.mean(jax.nn.log_softmax(sim, axis=1)[idx, idx])
    ce2 = -jnp.mean(jax.nn.log_softmax(sim.T, axis=1)[idx, idx])
    return ce + 0.5 * (ce1 + ce2), prec1


if __name__ == "__main__":
    def run_case(case_id, N, D, C, class_tile):
        key = jax.random.fold_in(jax.random.PRNGKey(0), case_id)
        kx, kw, kl = jax.random.split(key, 3)
        x = jax.random.normal(kx, (N, 2, D), dtype=jnp.float32)
        label = jax.random.randint(kl, (N,), 0, C, dtype=jnp.int32)
        xavier_std = math.sqrt(2.0 / (C + D))
        W = xavier_std * jax.random.normal(kw, (C, D), dtype=jnp.float32)

        loss, prec1 = combined_loss(x, label, W, 10.0, -5.0,
                                    margin=0.2, scale=30.0, class_tile=class_tile)
        loss = jax.block_until_ready(loss)
        prec1 = jax.block_until_ready(prec1)
        assert jnp.isfinite(loss) and jnp.isfinite(prec1)

        loss_r, prec1_r = _reference(x, label, W, 10.0, -5.0, 0.2, 30.0)
        assert abs(float(loss) - float(loss_r)) < 0.5, (case_id, float(loss), float(loss_r))
        assert abs(float(prec1) - float(prec1_r)) <= 100.0 / N + 1e-3
        assert 0.0 <= float(prec1) <= 100.0

    # case 1: small nOut (transposed-weight path), 3 class tiles w/ tail padding, 2 row tiles
    run_case(1, N=16, D=64, C=600, class_tile=256)
    # case 2: lane-dense nOut (weight kept in (C, D) layout), single class tile, no padding
    run_case(2, N=8, D=256, C=384, class_tile=None)
    print("KERNEL_OK")
</pallas_src>

<mosaic_0001>
module attributes {stable_mosaic.version = 11 : i64} {
  func.func @_loss_kernel(%arg0: i32, %arg1: i32, %arg2: memref<16x64xbf16, #tpu.memory_space<vmem>>, %arg3: memref<64x256xbf16, #tpu.memory_space<vmem>>, %arg4: memref<16x1xi32, #tpu.memory_space<vmem>>, %arg5: memref<16x64xf32, #tpu.memory_space<vmem>>, %arg6: memref<16x64xf32, #tpu.memory_space<vmem>>, %arg7: memref<1x128xf32, #tpu.memory_space<vmem>>, %arg8: memref<16x2xf32, #tpu.memory_space<vmem>>, %arg9: memref<8x128xf32, #tpu.memory_space<vmem>>, %arg10: memref<16x1xf32, #tpu.memory_space<vmem>>, %arg11: memref<16x1xf32, #tpu.memory_space<vmem>>, %arg12: memref<16x1xf32, #tpu.memory_space<vmem>>) attributes {dimension_semantics = [#tpu.dimension_semantics<parallel>, #tpu.dimension_semantics<arbitrary>], iteration_bounds = array<i64: 2, 3>, scalar_prefetch = 0 : i64, scratch_operands = 3 : i64, tpu.core_type = #tpu.core_type<tc>, window_params = [{transform_indices = @transform_0, window_bounds = array<i64: 16, 64>}, {transform_indices = @transform_1, window_bounds = array<i64: 64, 256>}, {transform_indices = @transform_2, window_bounds = array<i64: 16, 1>}, {pipeline_mode = #tpu.pipeline_mode<synchronous>, transform_indices = @transform_3, window_bounds = array<i64: 16, 64>}, {pipeline_mode = #tpu.pipeline_mode<synchronous>, transform_indices = @transform_4, window_bounds = array<i64: 16, 64>}, {pipeline_mode = #tpu.pipeline_mode<synchronous>, transform_indices = @transform_5, window_bounds = array<i64: 1, 128>}, {transform_indices = @transform_6, window_bounds = array<i64: 16, 2>}, {transform_indices = @transform_7, window_bounds = array<i64: 8, 128>}]} {
    %c0_i32 = arith.constant 0 : i32
    %0 = arith.cmpi eq, %arg1, %c0_i32 : i32
    %1 = arith.extui %0 : i1 to i32
    %c0_i32_0 = arith.constant 0 : i32
    %2 = arith.cmpi ne, %1, %c0_i32_0 : i32
    scf.if %2 {
      %cst_30 = arith.constant -1.000000e+30 : f32
      %56 = vector.broadcast %cst_30 : f32 to vector<16x1xf32>
      %c0_31 = arith.constant 0 : index
      %c0_32 = arith.constant 0 : index
      %57 = vector.load %arg10[%c0_31, %c0_32] : memref<16x1xf32, #tpu.memory_space<vmem>>, vector<16x1xf32>
      tpu.vector_store %arg10[%c0_31, %c0_32], %56 {strides = array<i32>} : memref<16x1xf32, #tpu.memory_space<vmem>>, vector<16x1xf32>,
      %cst_33 = arith.constant 0.000000e+00 : f32
      %58 = vector.broadcast %cst_33 : f32 to vector<16x1xf32>
      %c0_34 = arith.constant 0 : index
      %c0_35 = arith.constant 0 : index
      %59 = vector.load %arg11[%c0_34, %c0_35] : memref<16x1xf32, #tpu.memory_space<vmem>>, vector<16x1xf32>
      tpu.vector_store %arg11[%c0_34, %c0_35], %58 {strides = array<i32>} : memref<16x1xf32, #tpu.memory_space<vmem>>, vector<16x1xf32>,
      %cst_36 = arith.constant 0.000000e+00 : f32
      %60 = vector.broadcast %cst_36 : f32 to vector<16x1xf32>
      %c0_37 = arith.constant 0 : index
      %c0_38 = arith.constant 0 : index
      %61 = vector.load %arg12[%c0_37, %c0_38] : memref<16x1xf32, #tpu.memory_space<vmem>>, vector<16x1xf32>
      tpu.vector_store %arg12[%c0_37, %c0_38], %60 {strides = array<i32>} : memref<16x1xf32, #tpu.memory_space<vmem>>, vector<16x1xf32>,
    } else {
    }
    %c0 = arith.constant 0 : index
    %c0_1 = arith.constant 0 : index
    %3 = vector.load %arg2[%c0, %c0_1] : memref<16x64xbf16, #tpu.memory_space<vmem>>, vector<16x64xbf16>
    %c0_2 = arith.constant 0 : index
    %c0_3 = arith.constant 0 : index
    %4 = vector.load %arg3[%c0_2, %c0_3] : memref<64x256xbf16, #tpu.memory_space<vmem>>, vector<64x256xbf16>
    %cst = arith.constant dense<0.000000e+00> : vector<16x256xf32>
    %5 = tpu.matmul %3, %4, %cst {dimension_numbers = #tpu.dot_dimension_numbers<[1], [0], [0], [1], [0, 0, 1, 1], [], []>} : vector<16x64xbf16>, vector<64x256xbf16>, vector<16x256xf32> -> vector<16x256xf32>
    %6 = tpu.iota {dimensions = array<i32: 1>} : vector<16x256xi32>
    %c0_4 = arith.constant 0 : index
    %c0_5 = arith.constant 0 : index
    %7 = vector.load %arg4[%c0_4, %c0_5] : memref<16x1xi32, #tpu.memory_space<vmem>>, vector<16x1xi32>
    %c256_i32 = arith.constant 256 : i32
    %8 = arith.muli %arg1, %c256_i32 : i32
    %9 = vector.broadcast %8 : i32 to vector<16x1xi32>
    %10 = arith.subi %7, %9 : vector<16x1xi32>
    %11 = vector.broadcast %10 : vector<16x1xi32> to vector<16x256xi32>
    %12 = arith.cmpi eq, %6, %11 : vector<16x256xi32>
    %c0_6 = arith.constant 0 : index
    %c0_7 = arith.constant 0 : index
    %13 = vector.load %arg12[%c0_6, %c0_7] : memref<16x1xf32, #tpu.memory_space<vmem>>, vector<16x1xf32>
    %cst_8 = arith.constant 0.000000e+00 : f32
    %14 = vector.broadcast %cst_8 : f32 to vector<16x256xf32>
    %15 = arith.select %12, %5, %14 : vector<16x256xi1>, vector<16x256xf32>
    %cst_9 = arith.constant dense<0.000000e+00> : vector<16xf32>
    %16 = vector.multi_reduction <add>, %15, %cst_9 [1] : vector<16x256xf32> to vector<16xf32>
    %17 = vector.shape_cast %16 : vector<16xf32> to vector<16x1xf32>
    %18 = arith.addf %13, %17 : vector<16x1xf32>
    %c0_10 = arith.constant 0 : index
    %c0_11 = arith.constant 0 : index
    %19 = vector.load %arg12[%c0_10, %c0_11] : memref<16x1xf32, #tpu.memory_space<vmem>>, vector<16x1xf32>
    tpu.vector_store %arg12[%c0_10, %c0_11], %18 {strides = array<i32>} : memref<16x1xf32, #tpu.memory_space<vmem>>, vector<16x1xf32>,
    %cst_12 = arith.constant -1.000000e+30 : f32
    %20 = vector.broadcast %cst_12 : f32 to vector<16x256xf32>
    %21 = arith.select %12, %20, %5 : vector<16x256xi1>, vector<16x256xf32>
    %22 = tpu.iota {dimensions = array<i32: 1>} : vector<1x256xi32>
    %c256_i32_13 = arith.constant 256 : i32
    %23 = arith.muli %arg1, %c256_i32_13 : i32
    %c600_i32 = arith.constant 600 : i32
    %24 = arith.subi %c600_i32, %23 : i32
    %25 = vector.broadcast %24 : i32 to vector<1x256xi32>
    %26 = arith.cmpi slt, %22, %25 : vector<1x256xi32>
    %cst_14 = arith.constant 0.000000e+00 : f32
    %cst_15 = arith.constant -1.000000e+09 : f32
    %27 = vector.broadcast %cst_14 : f32 to vector<1x256xf32>
    %28 = vector.broadcast %cst_15 : f32 to vector<1x256xf32>
    %29 = arith.select %26, %27, %28 : vector<1x256xi1>, vector<1x256xf32>
    %30 = vector.broadcast %29 : vector<1x256xf32> to vector<16x256xf32>
    %31 = arith.addf %21, %30 : vector<16x256xf32>
    %c0_16 = arith.constant 0 : index
    %c0_17 = arith.constant 0 : index
    %32 = vector.load %arg10[%c0_16, %c0_17] : memref<16x1xf32, #tpu.memory_space<vmem>>, vector<16x1xf32>
    %cst_18 = arith.constant dense<0xFF800000> : vector<16xf32>
    %33 = vector.multi_reduction <maximumf>, %31, %cst_18 [1] : vector<16x256xf32> to vector<16xf32>
    %34 = vector.shape_cast %33 : vector<16xf32> to vector<16x1xf32>
    %35 = arith.maximumf %32, %34 : vector<16x1xf32>
    %c0_19 = arith.constant 0 : index
    %c0_20 = arith.constant 0 : index
    %36 = vector.load %arg11[%c0_19, %c0_20] : memref<16x1xf32, #tpu.memory_space<vmem>>, vector<16x1xf32>
    %37 = arith.subf %32, %35 : vector<16x1xf32>
    %38 = math.exp %37 : vector<16x1xf32>
    %39 = arith.mulf %36, %38 : vector<16x1xf32>
    %40 = vector.broadcast %35 : vector<16x1xf32> to vector<16x256xf32>
    %41 = arith.subf %31, %40 : vector<16x256xf32>
    %42 = math.exp %41 : vector<16x256xf32>
    %cst_21 = arith.constant dense<0.000000e+00> : vector<16xf32>
    %43 = vector.multi_reduction <add>, %42, %cst_21 [1] : vector<16x256xf32> to vector<16xf32>
    %44 = vector.shape_cast %43 : vector<16xf32> to vector<16x1xf32>
    %45 = arith.addf %39, %44 : vector<16x1xf32>
    %c0_22 = arith.constant 0 : index
    %c0_23 = arith.constant 0 : index
    %46 = vector.load %arg11[%c0_22, %c0_23] : memref<16x1xf32, #tpu.memory_space<vmem>>, vector<16x1xf32>
    tpu.vector_store %arg11[%c0_22, %c0_23], %45 {strides = array<i32>} : memref<16x1xf32, #tpu.memory_space<vmem>>, vector<16x1xf32>,
    %c0_24 = arith.constant 0 : index
    %c0_25 = arith.constant 0 : index
    %47 = vector.load %arg10[%c0_24, %c0_25] : memref<16x1xf32, #tpu.memory_space<vmem>>, vector<16x1xf32>
    tpu.vector_store %arg10[%c0_24, %c0_25], %35 {strides = array<i32>} : memref<16x1xf32, #tpu.memory_space<vmem>>, vector<16x1xf32>,
    %c2_i32 = arith.constant 2 : i32
    %48 = arith.cmpi eq, %arg1, %c2_i32 : i32
    %49 = arith.extui %48 : i1 to i32
    %c0_i32_26 = arith.constant 0 : i32
    %50 = arith.cmpi ne, %49, %c0_i32_26 : i32
    scf.if %50 {
      %c0_30 = arith.constant 0 : index
      %c0_31 = arith.constant 0 : index
      %56 = vector.load %arg12[%c0_30, %c0_31] : memref<16x1xf32, #tpu.memory_space<vmem>>, vector<16x1xf32>
      %c0_32 = arith.constant 0 : index
      %c0_33 = arith.constant 0 : index
      %57 = vector.load %arg10[%c0_32, %c0_33] : memref<16x1xf32, #tpu.memory_space<vmem>>, vector<16x1xf32>
      %cst_34 = arith.constant 0.0333333351 : f32
      %58 = vector.broadcast %cst_34 : f32 to vector<16x1xf32>
      %59 = arith.mulf %56, %58 : vector<16x1xf32>
      %60 = arith.mulf %59, %59 : vector<16x1xf32>
      %cst_35 = arith.constant 1.000000e+00 : f32
      %61 = vector.broadcast %cst_35 : f32 to vector<16x1xf32>
      %62 = arith.subf %61, %60 : vector<16x1xf32>
      %cst_36 = arith.constant 0.000000e+00 : f32
      %cst_37 = arith.constant 1.000000e+00 : f32
      %63 = vector.broadcast %cst_36 : f32 to vector<16x1xf32>
      %64 = arith.maximumf %63, %62 : vector<16x1xf32>
      %65 = vector.broadcast %cst_37 : f32 to vector<16x1xf32>
      %66 = arith.minimumf %65, %64 : vector<16x1xf32>
      %67 = math.sqrt %66 : vector<16x1xf32>
      %cst_38 = arith.constant 0.980066597 : f32
      %68 = vector.broadcast %cst_38 : f32 to vector<16x1xf32>
      %69 = arith.mulf %59, %68 : vector<16x1xf32>
      %cst_39 = arith.constant 0.198669329 : f32
      %70 = vector.broadcast %cst_39 : f32 to vector<16x1xf32>
      %71 = arith.mulf %67, %70 : vector<16x1xf32>
      %72 = arith.subf %69, %71 : vector<16x1xf32>
      %cst_40 = arith.constant -0.980066597 : f32
      %73 = vector.broadcast %cst_40 : f32 to vector<16x1xf32>
      %74 = arith.subf %59, %73 : vector<16x1xf32>
      %cst_41 = arith.constant 0.000000e+00 : f32
      %75 = vector.broadcast %cst_41 : f32 to vector<16x1xf32>
      %76 = arith.cmpf ogt, %74, %75 : vector<16x1xf32>
      %cst_42 = arith.constant 0.0397338644 : f32
      %77 = vector.broadcast %cst_42 : f32 to vector<16x1xf32>
      %78 = arith.subf %59, %77 : vector<16x1xf32>
      %79 = arith.select %76, %72, %78 : vector<16x1xi1>, vector<16x1xf32>
      %cst_43 = arith.constant 3.000000e+01 : f32
      %80 = vector.broadcast %cst_43 : f32 to vector<16x1xf32>
      %81 = arith.mulf %79, %80 : vector<16x1xf32>
      %82 = arith.maximumf %57, %81 : vector<16x1xf32>
      %c0_44 = arith.constant 0 : index
      %c0_45 = arith.constant 0 : index
      %83 = vector.load %arg11[%c0_44, %c0_45] : memref<16x1xf32, #tpu.memory_space<vmem>>, vector<16x1xf32>
      %84 = arith.subf %57, %82 : vector<16x1xf32>
      %85 = math.exp %84 : vector<16x1xf32>
      %86 = arith.mulf %83, %85 : vector<16x1xf32>
      %87 = arith.subf %81, %82 : vector<16x1xf32>
      %88 = math.exp %87 : vector<16x1xf32>
      %89 = arith.addf %86, %88 : vector<16x1xf32>
      %90 = math.log %89 : vector<16x1xf32>
      %91 = arith.addf %82, %90 : vector<16x1xf32>
      %c16_i32 = arith.constant 16 : i32
      %92 = arith.muli %arg0, %c16_i32 : i32
      %93 = tpu.iota {dimensions = array<i32: 0>} : vector<16x1xi32>
      %94 = vector.broadcast %92 : i32 to vector<16x1xi32>
      %95 = arith.addi %94, %93 : vector<16x1xi32>
      %c32_i32 = arith.constant 32 : i32
      %96 = vector.broadcast %c32_i32 : i32 to vector<16x1xi32>
      %97 = arith.cmpi slt, %95, %96 : vector<16x1xi32>
      %98 = arith.subf %91, %81 : vector<16x1xf32>
      %cst_46 = arith.constant 0.000000e+00 : f32
      %99 = vector.broadcast %cst_46 : f32 to vector<16x1xf32>
      %100 = arith.select %97, %98, %99 : vector<16x1xi1>, vector<16x1xf32>
      %c0_47 = arith.constant 0 : index
      %c0_48 = arith.constant 0 : index
      %101 = vector.load %arg8[%c0_47, %c0_48] : memref<16x2xf32, #tpu.memory_space<vmem>>, vector<16x1xf32>
      tpu.vector_store %arg8[%c0_47, %c0_48], %100 {strides = array<i32>} : memref<16x2xf32, #tpu.memory_space<vmem>>, vector<16x1xf32>,
      %102 = arith.cmpf oge, %81, %57 : vector<16x1xf32>
      %103 = arith.andi %97, %102 : vector<16x1xi1>
      %cst_49 = arith.constant 1.000000e+00 : f32
      %cst_50 = arith.constant 0.000000e+00 : f32
      %104 = vector.broadcast %cst_49 : f32 to vector<16x1xf32>
      %105 = vector.broadcast %cst_50 : f32 to vector<16x1xf32>
      %106 = arith.select %103, %104, %105 : vector<16x1xi1>, vector<16x1xf32>
      %c0_51 = arith.constant 0 : index
      %c1 = arith.constant 1 : index
      %107 = vector.load %arg8[%c0_51, %c1] : memref<16x2xf32, #tpu.memory_space<vmem>>, vector<16x1xf32>
      tpu.vector_store %arg8[%c0_51, %c1], %106 {strides = array<i32>} : memref<16x2xf32, #tpu.memory_space<vmem>>, vector<16x1xf32>,
      %cst_52 = arith.constant 0.000000e+00 : f32
      %108 = vector.broadcast %cst_52 : f32 to vector<8x128xf32>
      %c0_53 = arith.constant 0 : index
      %c0_54 = arith.constant 0 : index
      %109 = vector.load %arg9[%c0_53, %c0_54] : memref<8x128xf32, #tpu.memory_space<vmem>>, vector<8x128xf32>
      tpu.vector_store %arg9[%c0_53, %c0_54], %108 {strides = array<i32>} : memref<8x128xf32, #tpu.memory_space<vmem>>, vector<8x128xf32>,
    } else {
    }
    %c2_i32_27 = arith.constant 2 : i32
    %51 = arith.cmpi eq, %arg1, %c2_i32_27 : i32
    %c0_i32_28 = arith.constant 0 : i32
    %52 = arith.cmpi eq, %arg0, %c0_i32_28 : i32
    %53 = arith.andi %51, %52 : i1
    %54 = arith.extui %53 : i1 to i32
    %c0_i32_29 = arith.constant 0 : i32
    %55 = arith.cmpi ne, %54, %c0_i32_29 : i32
    scf.if %55 {
      %c0_30 = arith.constant 0 : index
      %c0_31 = arith.constant 0 : index
      %56 = vector.load %arg5[%c0_30, %c0_31] : memref<16x64xf32, #tpu.memory_space<vmem>>, vector<16x64xf32>
      %c0_32 = arith.constant 0 : index
      %c0_33 = arith.constant 0 : index
      %57 = vector.load %arg6[%c0_32, %c0_33] : memref<16x64xf32, #tpu.memory_space<vmem>>, vector<16x64xf32>
      %cst_34 = arith.constant dense<0.000000e+00> : vector<16x16xf32>
      %58 = tpu.matmul %56, %57, %cst_34 {dimension_numbers = #tpu.dot_dimension_numbers<[1], [1], [0], [0], [0, 0, 1, 0], [], []>} : vector<16x64xf32>, vector<16x64xf32>, vector<16x16xf32> -> vector<16x16xf32>
      %c0_35 = arith.constant 0 : index
      %c0_36 = arith.constant 0 : index
      %59 = vector.load %arg7[%c0_35, %c0_36] : memref<1x128xf32, #tpu.memory_space<vmem>>, vector<1x128xf32>
      %60 = vector.extract_strided_slice %59 {offsets = [0, 0], sizes = [1, 1], strides = [1, 1]} : vector<1x128xf32> to vector<1x1xf32>
      %61 = vector.broadcast %60 : vector<1x1xf32> to vector<16x16xf32>
      %62 = arith.mulf %58, %61 : vector<16x16xf32>
      %63 = vector.extract_strided_slice %59 {offsets = [0, 1], sizes = [1, 1], strides = [1, 1]} : vector<1x128xf32> to vector<1x1xf32>
      %64 = vector.broadcast %63 : vector<1x1xf32> to vector<16x16xf32>
      %65 = arith.addf %62, %64 : vector<16x16xf32>
      %66 = tpu.iota {dimensions = array<i32: 0>} : vector<16x16xi32>
      %67 = tpu.iota {dimensions = array<i32: 1>} : vector<16x16xi32>
      %c16_i32 = arith.constant 16 : i32
      %68 = vector.broadcast %c16_i32 : i32 to vector<16x16xi32>
      %69 = arith.cmpi slt, %66, %68 : vector<16x16xi32>
      %c16_i32_37 = arith.constant 16 : i32
      %70 = vector.broadcast %c16_i32_37 : i32 to vector<16x16xi32>
      %71 = arith.cmpi slt, %67, %70 : vector<16x16xi32>
      %cst_38 = arith.constant -1.000000e+30 : f32
      %72 = vector.broadcast %cst_38 : f32 to vector<16x16xf32>
      %73 = arith.select %71, %65, %72 : vector<16x16xi1>, vector<16x16xf32>
      %cst_39 = arith.constant -1.000000e+30 : f32
      %74 = vector.broadcast %cst_39 : f32 to vector<16x16xf32>
      %75 = arith.select %69, %65, %74 : vector<16x16xi1>, vector<16x16xf32>
      %cst_40 = arith.constant dense<0xFF800000> : vector<16xf32>
      %76 = vector.multi_reduction <maximumf>, %73, %cst_40 [1] : vector<16x16xf32> to vector<16xf32>
      %77 = vector.shape_cast %76 : vector<16xf32> to vector<16x1xf32>
      %78 = vector.broadcast %77 : vector<16x1xf32> to vector<16x16xf32>
      %79 = arith.subf %73, %78 : vector<16x16xf32>
      %80 = math.exp %79 : vector<16x16xf32>
      %cst_41 = arith.constant dense<0.000000e+00> : vector<16xf32>
      %81 = vector.multi_reduction <add>, %80, %cst_41 [1] : vector<16x16xf32> to vector<16xf32>
      %82 = vector.shape_cast %81 : vector<16xf32> to vector<16x1xf32>
      %83 = math.log %82 : vector<16x1xf32>
      %84 = arith.addf %77, %83 : vector<16x1xf32>
      %85 = vector.extract_strided_slice %66 {offsets = [0, 0], sizes = [16, 1], strides = [1, 1]} : vector<16x16xi32> to vector<16x1xi32>
      %c16_i32_42 = arith.constant 16 : i32
      %86 = vector.broadcast %c16_i32_42 : i32 to vector<16x1xi32>
      %87 = arith.cmpi slt, %85, %86 : vector<16x1xi32>
      %cst_43 = arith.constant 0.000000e+00 : f32
      %88 = vector.broadcast %cst_43 : f32 to vector<16x1xf32>
      %89 = arith.select %87, %84, %88 : vector<16x1xi1>, vector<16x1xf32>
      %cst_44 = arith.constant dense<0.000000e+00> : vector<1xf32>
      %90 = vector.multi_reduction <add>, %89, %cst_44 [0] : vector<16x1xf32> to vector<1xf32>
      %91 = vector.shape_cast %90 : vector<1xf32> to vector<1x1xf32>
      %cst_45 = arith.constant dense<0xFF800000> : vector<16xf32>
      %92 = vector.multi_reduction <maximumf>, %75, %cst_45 [0] : vector<16x16xf32> to vector<16xf32>
      %93 = vector.shape_cast %92 : vector<16xf32> to vector<1x16xf32>
      %94 = vector.broadcast %93 : vector<1x16xf32> to vector<16x16xf32>
      %95 = arith.subf %75, %94 : vector<16x16xf32>
      %96 = math.exp %95 : vector<16x16xf32>
      %cst_46 = arith.constant dense<0.000000e+00> : vector<16xf32>
      %97 = vector.multi_reduction <add>, %96, %cst_46 [0] : vector<16x16xf32> to vector<16xf32>
      %98 = vector.shape_cast %97 : vector<16xf32> to vector<1x16xf32>
      %99 = math.log %98 : vector<1x16xf32>
      %100 = arith.addf %93, %99 : vector<1x16xf32>
      %101 = vector.extract_strided_slice %67 {offsets = [0, 0], sizes = [1, 16], strides = [1, 1]} : vector<16x16xi32> to vector<1x16xi32>
      %c16_i32_47 = arith.constant 16 : i32
      %102 = vector.broadcast %c16_i32_47 : i32 to vector<1x16xi32>
      %103 = arith.cmpi slt, %101, %102 : vector<1x16xi32>
      %cst_48 = arith.constant 0.000000e+00 : f32
      %104 = vector.broadcast %cst_48 : f32 to vector<1x16xf32>
      %105 = arith.select %103, %100, %104 : vector<1x16xi1>, vector<1x16xf32>
      %cst_49 = arith.constant dense<0.000000e+00> : vector<1xf32>
      %106 = vector.multi_reduction <add>, %105, %cst_49 [1] : vector<1x16xf32> to vector<1xf32>
      %107 = vector.shape_cast %106 : vector<1xf32> to vector<1x1xf32>
      %108 = arith.cmpi eq, %66, %67 : vector<16x16xi32>
      %109 = arith.andi %108, %69 : vector<16x16xi1>
      %110 = arith.andi %109, %71 : vector<16x16xi1>
      %cst_50 = arith.constant 0.000000e+00 : f32
      %111 = vector.broadcast %cst_50 : f32 to vector<16x16xf32>
      %112 = arith.select %110, %65, %111 : vector<16x16xi1>, vector<16x16xf32>
      %cst_51 = arith.constant dense<0.000000e+00> : vector<16xf32>
      %113 = vector.multi_reduction <add>, %112, %cst_51 [1] : vector<16x16xf32> to vector<16xf32>
      %114 = vector.shape_cast %113 : vector<16xf32> to vector<16x1xf32>
      %cst_52 = arith.constant dense<0.000000e+00> : vector<1xf32>
      %115 = vector.multi_reduction <add>, %114, %cst_52 [0] : vector<16x1xf32> to vector<1xf32>
      %116 = vector.shape_cast %115 : vector<1xf32> to vector<1x1xf32>
      %117 = arith.subf %91, %116 : vector<1x1xf32>
      %118 = arith.subf %107, %116 : vector<1x1xf32>
      %119 = arith.addf %117, %118 : vector<1x1xf32>
      %cst_53 = arith.constant 5.000000e-01 : f32
      %120 = vector.broadcast %cst_53 : f32 to vector<1x1xf32>
      %121 = arith.mulf %120, %119 : vector<1x1xf32>
      %cst_54 = arith.constant 1.600000e+01 : f32
      %122 = vector.broadcast %cst_54 : f32 to vector<1x1xf32>
      %123 = arith.divf %121, %122 : vector<1x1xf32>
      %124 = vector.shape_cast %123 : vector<1x1xf32> to vector<1x1xf32>
      %125 = vector.broadcast %124 : vector<1x1xf32> to vector<8x128xf32>
      %c0_55 = arith.constant 0 : index
      %c0_56 = arith.constant 0 : index
      %126 = vector.load %arg9[%c0_55, %c0_56] : memref<8x128xf32, #tpu.memory_space<vmem>>, vector<8x128xf32>
      tpu.vector_store %arg9[%c0_55, %c0_56], %125 {strides = array<i32>} : memref<8x128xf32, #tpu.memory_space<vmem>>, vector<8x128xf32>,
    } else {
    }
    return
  }
  func.func @transform_0(%arg0: i32, %arg1: i32) -> (i32, i32) {
    %c0_i32 = arith.constant 0 : i32
    %c0_i32_0 = arith.constant 0 : i32
    return %arg0, %c0_i32 : i32, i32
  }
  func.func @transform_1(%arg0: i32, %arg1: i32) -> (i32, i32) {
    %c0_i32 = arith.constant 0 : i32
    %c0_i32_0 = arith.constant 0 : i32
    return %c0_i32, %arg1 : i32, i32
  }
  func.func @transform_2(%arg0: i32, %arg1: i32) -> (i32, i32) {
    %c0_i32 = arith.constant 0 : i32
    %c0_i32_0 = arith.constant 0 : i32
    return %arg0, %c0_i32 : i32, i32
  }
  func.func @transform_3(%arg0: i32, %arg1: i32) -> (i32, i32) {
    %c0_i32 = arith.constant 0 : i32
    %c0_i32_0 = arith.constant 0 : i32
    %c0_i32_1 = arith.constant 0 : i32
    return %c0_i32, %c0_i32_0 : i32, i32
  }
  func.func @transform_4(%arg0: i32, %arg1: i32) -> (i32, i32) {
    %c0_i32 = arith.constant 0 : i32
    %c0_i32_0 = arith.constant 0 : i32
    %c0_i32_1 = arith.constant 0 : i32
    return %c0_i32, %c0_i32_0 : i32, i32
  }
  func.func @transform_5(%arg0: i32, %arg1: i32) -> (i32, i32) {
    %c0_i32 = arith.constant 0 : i32
    %c0_i32_0 = arith.constant 0 : i32
    %c0_i32_1 = arith.constant 0 : i32
    return %c0_i32, %c0_i32_0 : i32, i32
  }
  func.func @transform_6(%arg0: i32, %arg1: i32) -> (i32, i32) {
    %c0_i32 = arith.constant 0 : i32
    %c0_i32_0 = arith.constant 0 : i32
    return %arg0, %c0_i32 : i32, i32
  }
  func.func @transform_7(%arg0: i32, %arg1: i32) -> (i32, i32) {
    %c0_i32 = arith.constant 0 : i32
    %c0_i32_0 = arith.constant 0 : i32
    return %arg0, %c0_i32 : i32, i32
  }
}

</mosaic_0001>

<llo_original>
// kernel: tpu_custom_call.1
$region0: #{tpu_custom_call.1}
  #allocation0 [shape = 'u32[]', space=smem, size = 0x4, offset = 0x4, fixed_abs, tag = 'smem constant byte address 0x4 - core index']
  #allocation1 [shape = 'u32[144,128]{1,0:T(1,128)}', space=vmem, size = 0x12000, scoped, tag = 'internal scratch']
  #allocation2 [shape = 'f32[16,1]{1,0:T(8,128)}', space=vmem, size = 0x2000, scoped, tag = 'scratch operand']
  #allocation3 [shape = 'f32[16,1]{1,0:T(8,128)}', space=vmem, size = 0x2000, scoped, tag = 'scratch operand']
  #allocation4 [shape = 'f32[16,1]{1,0:T(8,128)}', space=vmem, size = 0x2000, scoped, tag = 'scratch operand']
  %s0 = inlined_call_operand.vmem [shape: bf16[32,64], index: 0, kind: input, shape index: {}]
  %s1 = inlined_call_operand.hbm [shape: bf16[64,768], index: 1, kind: input, shape index: {}]
  %s2 = inlined_call_operand.vmem [shape: s32[32,1], index: 2, kind: input, shape index: {}]
  %s3 = inlined_call_operand.vmem [shape: f32[16,64], index: 3, kind: input, shape index: {}]
  %s4 = inlined_call_operand.vmem [shape: f32[16,64], index: 4, kind: input, shape index: {}]
  %s5 = inlined_call_operand.vmem [shape: f32[1,128], index: 5, kind: input, shape index: {}]
  %s6 = inlined_call_operand.vmem [shape: f32[32,2], index: 6, kind: output, shape index: {0}]
  %s7 = inlined_call_operand.hbm [shape: f32[16,128], index: 7, kind: output, shape index: {1}]
  %8 = xla_tuple %s6, %s7
  %s9 = sld [smem:[#allocation0]]
  $region81: #{tpu_custom_call.1} parent=0
    _
  %s11 = ssub.s32 1, %s9
  %s12 = scalar_select 0, %s11, %s9
  $region1: #{tpu_custom_call.1} parent=0
    #allocation5 [shape = 'u8[65536]{0}', space=vmem, size = 0x10000, scoped, tag = 'input window, operand 1']
    #allocation6 [shape = 's32[2]{0}', space=sflag, size = 0x8, scoped, tag = 'scoped memory for tpu_custom_call.1']
    #allocation7 [shape = 's32[2]{0}', space=sflag, size = 0x8, scoped, tag = 'scoped memory for tpu_custom_call.1']
    #allocation8 [shape = 'u8[8192]{0}', space=vmem, size = 0x2000, scoped, tag = 'output window, operand 1']
    %13 = vsyncpa [#allocation6], 0
    %s14 = scalar_lea.sflag [#allocation6], 1
    %15 = vsyncpa %s14, 0
    %16 = vsyncpa [#allocation7], 0
    %s17 = scalar_lea.sflag [#allocation7], 1
    %18 = vsyncpa %s17, 0
    loop: start=0, step=1, limit=8
    $region2: #{tpu_custom_call.1} parent=1 // loop_pre_header
      _
    $region3: #{tpu_custom_call.1} parent=1 // loop_header
      %s20 = sphi 0, %s24
      %p21 = scmp.ge.s32.totalorder %s20, 8
      %s27 = sphi 0, %s39
      %s28 = sphi 0, %s35
      %s29 = sphi 0, %s27
      %s30 = sphi 0, %s28
      %s31 = sphi 0, %s29
      %s32 = sphi 0, %s30
      %s42 = sphi 0, %s44
      %s45 = sphi 0, %s42
      %s46 = sphi 0, %s45
      %s62 = sphi 0, %s46
      %s68 = sphi 0, %s70
      %s71 = sphi 0, %s68
      %s72 = sphi 0, %s71
      %s88 = sphi 0, %s72
      %s94 = sphi 0, %s96
      %s97 = sphi 0, %s94
      %s98 = sphi 0, %s97
      %s114 = sphi 0, %s98
      %s118 = sphi 0, %s118
      %s120 = sphi 0, %s118
      %s121 = sphi 0, %s120
      %s135 = sphi 0, %s121
      %s139 = sphi 0, %s139
      %s141 = sphi 0, %s139
      %s142 = sphi 0, %s141
      %s156 = sphi 0, %s142
      %s160 = sphi 0, %s160
      %s162 = sphi 0, %s160
      %s163 = sphi 0, %s162
      %s177 = sphi 0, %s163
      %s183 = sphi 0, %s185
      %s186 = sphi 0, %s183
      %s187 = sphi 0, %s186
      %s203 = sphi 0, %s187
      %s209 = sphi 0, %s211
      %s212 = sphi 0, %s209
      %s213 = sphi 0, %s212
      %s229 = sphi 0, %s213
    $region4: #{tpu_custom_call.1} parent=1 // loop_header_branch
      %23 = sbr.rel (%p21) target = $region8
    $region5: #{tpu_custom_call.1} parent=1 // loop_body
      %s25 = ssub.s32 %s20, 1
      %s26 = ssub.s32 %s20, 2
      %s33 = sadd.s32 1, %s28
      %p34 = scmp.ge.s32.totalorder %s33, 3
      %s35 = scalar_select %p34, 0, %s33
      %s36 = sadd.s32 1, %s27
      %s37 = scalar_select %p34, %s36, %s27
      %p38 = scmp.ge.s32.totalorder %s37, 2
      %s39 = scalar_select %p38, 0, %s37
      %s40 = ssub.s32 %s27, %s39
      %p41 = scmp.eq.s32.totalorder %s40, 0
      %s43 = sadd.s32 %s42, 1
      %s44 = scalar_select %p41, %s42, %s43
      %p47 = pneg %p41
      %p48 = scmp.eq.s32.totalorder %s20, 5
      %p49 = por %p47, %p48
      %p50 = scmp.ne.s32.totalorder %s42, %s45
      %p51 = scmp.eq.s32.totalorder %s20, 0
      %p52 = por %p50, %p51
      %p53 = scmp.ne.s32.totalorder %s42, %s45
      %p54 = scmp.eq.s32.totalorder %s25, 5
      %p55 = por %p53, %p54
      %p56 = scmp.ne.s32.totalorder %s45, %s46
      %p57 = scmp.eq.s32.totalorder %s25, 0
      %p58 = por %p56, %p57
      %p59 = scmp.ne.s32.totalorder %s45, %s46
      %p60 = scmp.eq.s32.totalorder %s26, 5
      %p61 = por %p59, %p60
      %p63 = scmp.ne.s32.totalorder %s46, %s62
      %p64 = scmp.eq.s32.totalorder %s26, 0
      %p65 = por %p63, %p64
      %s66 = ssub.s32 %s28, %s35
      %p67 = scmp.eq.s32.totalorder %s66, 0
      %s69 = sadd.s32 %s68, 1
      %s70 = scalar_select %p67, %s68, %s69
      %p73 = pneg %p67
      %p74 = scmp.eq.s32.totalorder %s20, 5
      %p75 = por %p73, %p74
      %p76 = scmp.ne.s32.totalorder %s68, %s71
      %p77 = scmp.eq.s32.totalorder %s20, 0
      %p78 = por %p76, %p77
      %p79 = scmp.ne.s32.totalorder %s68, %s71
      %p80 = scmp.eq.s32.totalorder %s25, 5
      %p81 = por %p79, %p80
      %p82 = scmp.ne.s32.totalorder %s71, %s72
      %p83 = scmp.eq.s32.totalorder %s25, 0
      %p84 = por %p82, %p83
      %p85 = scmp.ne.s32.totalorder %s71, %s72
      %p86 = scmp.eq.s32.totalorder %s26, 5
      %p87 = por %p85, %p86
      %p89 = scmp.ne.s32.totalorder %s72, %s88
      %p90 = scmp.eq.s32.totalorder %s26, 0
      %p91 = por %p89, %p90
      %s92 = ssub.s32 %s27, %s39
      %p93 = scmp.eq.s32.totalorder %s92, 0
      %s95 = sadd.s32 %s94, 1
      %s96 = scalar_select %p93, %s94, %s95
      %p99 = pneg %p93
      %p100 = scmp.eq.s32.totalorder %s20, 5
      %p101 = por %p99, %p100
      %p102 = scmp.ne.s32.totalorder %s94, %s97
      %p103 = scmp.eq.s32.totalorder %s20, 0
      %p104 = por %p102, %p103
      %p105 = scmp.ne.s32.totalorder %s94, %s97
      %p106 = scmp.eq.s32.totalorder %s25, 5
      %p107 = por %p105, %p106
      %p108 = scmp.ne.s32.totalorder %s97, %s98
      %p109 = scmp.eq.s32.totalorder %s25, 0
      %p110 = por %p108, %p109
      %p111 = scmp.ne.s32.totalorder %s97, %s98
      %p112 = scmp.eq.s32.totalorder %s26, 5
      %p113 = por %p111, %p112
      %p115 = scmp.ne.s32.totalorder %s98, %s114
      %p116 = scmp.eq.s32.totalorder %s26, 0
      %p117 = por %p115, %p116
      %s119 = sadd.s32 %s118, 1
      %p122 = scmp.eq.s32.totalorder %s20, 5
      %p123 = scmp.ne.s32.totalorder %s118, %s120
      %p124 = scmp.eq.s32.totalorder %s20, 0
      %p125 = por %p123, %p124
      %p126 = scmp.ne.s32.totalorder %s118, %s120
      %p127 = scmp.eq.s32.totalorder %s25, 5
      %p128 = por %p126, %p127
      %p129 = scmp.ne.s32.totalorder %s120, %s121
      %p130 = scmp.eq.s32.totalorder %s25, 0
      %p131 = por %p129, %p130
      %p132 = scmp.ne.s32.totalorder %s120, %s121
      %p133 = scmp.eq.s32.totalorder %s26, 5
      %p134 = por %p132, %p133
      %p136 = scmp.ne.s32.totalorder %s121, %s135
      %p137 = scmp.eq.s32.totalorder %s26, 0
      %p138 = por %p136, %p137
      %s140 = sadd.s32 %s139, 1
      %p143 = scmp.eq.s32.totalorder %s20, 5
      %p144 = scmp.ne.s32.totalorder %s139, %s141
      %p145 = scmp.eq.s32.totalorder %s20, 0
      %p146 = por %p144, %p145
      %p147 = scmp.ne.s32.totalorder %s139, %s141
      %p148 = scmp.eq.s32.totalorder %s25, 5
      %p149 = por %p147, %p148
      %p150 = scmp.ne.s32.totalorder %s141, %s142
      %p151 = scmp.eq.s32.totalorder %s25, 0
      %p152 = por %p150, %p151
      %p153 = scmp.ne.s32.totalorder %s141, %s142
      %p154 = scmp.eq.s32.totalorder %s26, 5
      %p155 = por %p153, %p154
      %p157 = scmp.ne.s32.totalorder %s142, %s156
      %p158 = scmp.eq.s32.totalorder %s26, 0
      %p159 = por %p157, %p158
      %s161 = sadd.s32 %s160, 1
      %p164 = scmp.eq.s32.totalorder %s20, 5
      %p165 = scmp.ne.s32.totalorder %s160, %s162
      %p166 = scmp.eq.s32.totalorder %s20, 0
      %p167 = por %p165, %p166
      %p168 = scmp.ne.s32.totalorder %s160, %s162
      %p169 = scmp.eq.s32.totalorder %s25, 5
      %p170 = por %p168, %p169
      %p171 = scmp.ne.s32.totalorder %s162, %s163
      %p172 = scmp.eq.s32.totalorder %s25, 0
      %p173 = por %p171, %p172
      %p174 = scmp.ne.s32.totalorder %s162, %s163
      %p175 = scmp.eq.s32.totalorder %s26, 5
      %p176 = por %p174, %p175
      %p178 = scmp.ne.s32.totalorder %s163, %s177
      %p179 = scmp.eq.s32.totalorder %s26, 0
      %p180 = por %p178, %p179
      %s181 = ssub.s32 %s27, %s39
      %p182 = scmp.eq.s32.totalorder %s181, 0
      %s184 = sadd.s32 %s183, 1
      %s185 = scalar_select %p182, %s183, %s184
      %p188 = pneg %p182
      %p189 = scmp.eq.s32.totalorder %s20, 5
      %p190 = por %p188, %p189
      %p191 = scmp.ne.s32.totalorder %s183, %s186
      %p192 = scmp.eq.s32.totalorder %s20, 0
      %p193 = por %p191, %p192
      %p194 = scmp.ne.s32.totalorder %s183, %s186
      %p195 = scmp.eq.s32.totalorder %s25, 5
      %p196 = por %p194, %p195
      %p197 = scmp.ne.s32.totalorder %s186, %s187
      %p198 = scmp.eq.s32.totalorder %s25, 0
      %p199 = por %p197, %p198
      %p200 = scmp.ne.s32.totalorder %s186, %s187
      %p201 = scmp.eq.s32.totalorder %s26, 5
      %p202 = por %p200, %p201
      %p204 = scmp.ne.s32.totalorder %s187, %s203
      %p205 = scmp.eq.s32.totalorder %s26, 0
      %p206 = por %p204, %p205
      %s207 = ssub.s32 %s27, %s39
      %p208 = scmp.eq.s32.totalorder %s207, 0
      %s210 = sadd.s32 %s209, 1
      %s211 = scalar_select %p208, %s209, %s210
      %p214 = pneg %p208
      %p215 = scmp.eq.s32.totalorder %s20, 5
      %p216 = por %p214, %p215
      %p217 = scmp.ne.s32.totalorder %s209, %s212
      %p218 = scmp.eq.s32.totalorder %s20, 0
      %p219 = por %p217, %p218
      %p220 = scmp.ne.s32.totalorder %s209, %s212
      %p221 = scmp.eq.s32.totalorder %s25, 5
      %p222 = por %p220, %p221
      %p223 = scmp.ne.s32.totalorder %s212, %s213
      %p224 = scmp.eq.s32.totalorder %s25, 0
      %p225 = por %p223, %p224
      %p226 = scmp.ne.s32.totalorder %s212, %s213
      %p227 = scmp.eq.s32.totalorder %s26, 5
      %p228 = por %p226, %p227
      %p230 = scmp.ne.s32.totalorder %s213, %s229
      %p231 = scmp.eq.s32.totalorder %s26, 0
      %p232 = por %p230, %p231
      %p233 = scmp.le.s32.totalorder 1, %s20
      %p234 = scmp.lt.s32.totalorder %s20, 7
      %p235 = pnand %p233, %p234
      %p236 = pneg %p235
      // Predicated region
      $region9: #{tpu_custom_call.1} parent=5 // pred_check
        _
      $region10: #{tpu_custom_call.1} parent=5 // pred_check_branch
        %238 = sbr.rel (%p235) target = $region12
      $region11: #{tpu_custom_call.1} parent=5 // pred_region
        %s239 = ssub.s32 %s20, 1
        // Predicated region
        $region13: #{tpu_custom_call.1} parent=11 // pred_check
          %p240 = pneg %p131
        $region14: #{tpu_custom_call.1} parent=11 // pred_check_branch
          %242 = sbr.rel (%p240) target = $region16
        $region15: #{tpu_custom_call.1} parent=11 // pred_region
          _
        $region16: #{tpu_custom_call.1} parent=11 // pred_fallthru
          _
        // Predicated region
        $region17: #{tpu_custom_call.1} parent=11 // pred_check
          %p243 = pneg %p152
        $region18: #{tpu_custom_call.1} parent=11 // pred_check_branch
          %245 = sbr.rel (%p243) target = $region20
        $region19: #{tpu_custom_call.1} parent=11 // pred_region
          _
        $region20: #{tpu_custom_call.1} parent=11 // pred_fallthru
          _
        // Predicated region
        $region21: #{tpu_custom_call.1} parent=11 // pred_check
          %p246 = pneg %p173
        $region22: #{tpu_custom_call.1} parent=11 // pred_check_branch
          %248 = sbr.rel (%p246) target = $region24
        $region23: #{tpu_custom_call.1} parent=11 // pred_region
          _
        $region24: #{tpu_custom_call.1} parent=11 // pred_fallthru
          _
      $region12: #{tpu_custom_call.1} parent=5 // pred_fallthru
        _
      %p249 = scmp.lt.s32.totalorder %s20, 6
      // Predicated region
      $region25: #{tpu_custom_call.1} parent=5 // pred_check
        %p250 = pneg %p249
      $region26: #{tpu_custom_call.1} parent=5 // pred_check_branch
        %252 = sbr.rel (%p250) target = $region28
      $region27: #{tpu_custom_call.1} parent=5 // pred_region
        // Predicated region
        $region29: #{tpu_custom_call.1} parent=27 // pred_check
          %p253 = pneg %p52
        $region30: #{tpu_custom_call.1} parent=27 // pred_check_branch
          %255 = sbr.rel (%p253) target = $region32
        $region31: #{tpu_custom_call.1} parent=27 // pred_region
          %s256 = smul.u32 2, %s27
          %p257 = scmp.lt.s32.totalorder %s256, 3
          %s258 = scalar_select %p257, %s256, 3
          %s259 = smul.addr %s258, 4
          %s260 = scalar_lea.vmem %s0, %s259
          %s261 = smul.u32 2, %s27
        $region32: #{tpu_custom_call.1} parent=27 // pred_fallthru
          _
        // Predicated region
        $region33: #{tpu_custom_call.1} parent=27 // pred_check
          %p262 = pneg %p78
        $region34: #{tpu_custom_call.1} parent=27 // pred_check_branch
          %264 = sbr.rel (%p262) target = $region36
        $region35: #{tpu_custom_call.1} parent=27 // pred_region
          %s265 = sand.u32 %s68, 1
          %s266 = scalar_lea.sflag [#allocation6], %s265
          %s267 = sand.u32 %s68, 1
          %s268 = smul.addr %s267, 64
          %s269 = scalar_lea.vmem [#allocation5], %s268
          %s270 = smul.u32 2, %s28
          %s272 = ssub.s32 1024, 1024
          %273 = vsyncadd %s266, %s272
          %s274 = smul.addr %s270, 64
          %s275 = scalar_lea.hbm %s1, %s274
          %s276 = sshll.u32 %s269, 4
          %s277 = int_to_ptr.vmem [resolvable:$true] %s276
          %282 = dma.hbm_to_vmem [thread:$0]  %s275, 1024, %s277, %s266, 384, 128, 8
        $region36: #{tpu_custom_call.1} parent=27 // pred_fallthru
          _
        // Predicated region
        $region37: #{tpu_custom_call.1} parent=27 // pred_check
          %p283 = pneg %p104
        $region38: #{tpu_custom_call.1} parent=27 // pred_check_branch
          %285 = sbr.rel (%p283) target = $region40
        $region39: #{tpu_custom_call.1} parent=27 // pred_region
          %s286 = smul.u32 2, %s27
          %p287 = scmp.lt.s32.totalorder %s286, 3
          %s288 = scalar_select %p287, %s286, 3
          %s289 = smul.addr %s288, 8
          %s290 = scalar_lea.vmem %s2, %s289
          %s291 = smul.u32 2, %s27
        $region40: #{tpu_custom_call.1} parent=27 // pred_fallthru
          _
      $region28: #{tpu_custom_call.1} parent=5 // pred_fallthru
        _
      %p292 = scmp.le.s32.totalorder 1, %s20
      %p293 = scmp.lt.s32.totalorder %s20, 7
      %p294 = pnand %p292, %p293
      %p295 = pneg %p294
      // Predicated region
      $region41: #{tpu_custom_call.1} parent=5 // pred_check
        _
      $region42: #{tpu_custom_call.1} parent=5 // pred_check_branch
        %297 = sbr.rel (%p294) target = $region44
      $region43: #{tpu_custom_call.1} parent=5 // pred_region
        %s298 = ssub.s32 %s20, 1
        %s299 = sand.u32 %s71, 1
        %s300 = scalar_lea.sflag [#allocation6], %s299
        %s301 = sand.u32 %s71, 1
        %s302 = smul.addr %s301, 64
        %s303 = scalar_lea.vmem [#allocation5], %s302
        // Predicated region
        $region45: #{tpu_custom_call.1} parent=43 // pred_check
          %p304 = pneg %p84
        $region46: #{tpu_custom_call.1} parent=43 // pred_check_branch
          %306 = sbr.rel (%p304) target = $region48
        $region47: #{tpu_custom_call.1} parent=43 // pred_region
          %307 = dma.done %s300, 1024
        $region48: #{tpu_custom_call.1} parent=43 // pred_fallthru
          _
        %s308 = smul.u32 2, %s29
        %p309 = scmp.lt.s32.totalorder %s308, 3
        %s310 = scalar_select %p309, %s308, 3
        %s311 = smul.addr %s310, 4
        %s312 = scalar_lea.vmem %s0, %s311
        %p313 = pneg %p58
        %p314 = pneg %p55
        %s315 = sand.u32 %s71, 1
        %s316 = scalar_lea.sflag [#allocation6], %s315
        %s317 = sand.u32 %s71, 1
        %s318 = smul.addr %s317, 64
        %s319 = scalar_lea.vmem [#allocation5], %s318
        %p320 = pneg %p84
        %p321 = pneg %p81
        %s322 = smul.u32 2, %s29
        %p323 = scmp.lt.s32.totalorder %s322, 3
        %s324 = scalar_select %p323, %s322, 3
        %s325 = smul.addr %s324, 8
        %s326 = scalar_lea.vmem %s2, %s325
        %p327 = pneg %p110
        %p328 = pneg %p107
        %p329 = pneg %p131
        %p330 = pneg %p128
        %p331 = pneg %p152
        %p332 = pneg %p149
        %p333 = pneg %p173
        %p334 = pneg %p170
        %p335 = pneg %p199
        %p336 = pneg %p196
        %s337 = smul.u32 2, %s29
        %p338 = scmp.lt.s32.totalorder %s337, 3
        %s339 = scalar_select %p338, %s337, 3
        %s340 = smul.addr %s339, 8
        %s341 = scalar_lea.vmem %s6, %s340
        %p342 = pneg %p225
        %p343 = pneg %p222
        %s344 = sand.u32 %s212, 1
        %s345 = scalar_lea.sflag [#allocation7], %s344
        %s346 = sand.u32 %s212, 1
        %s347 = smul.addr %s346, 8
        %s348 = scalar_lea.vmem [#allocation8], %s347
        %s349 = smul.u32 2, %s29
        %p350 = scmp.lt.s32.totalorder %s349, 3
        %s351 = scalar_select %p350, %s349, 3
        %s352 = smul.addr %s351, 4
        %s353 = scalar_lea.vmem %s0, %s352
        %s354 = smul.u32 2, %s29
        %s355 = smul.u32 2, %s30
        %s356 = smul.u32 2, %s29
        %p357 = scmp.lt.s32.totalorder %s356, 3
        %s358 = scalar_select %p357, %s356, 3
        %s359 = smul.addr %s358, 8
        %s360 = scalar_lea.vmem %s2, %s359
        %s361 = smul.u32 2, %s29
        %s362 = smul.u32 2, %s29
        %p363 = scmp.lt.s32.totalorder %s362, 3
        %s364 = scalar_select %p363, %s362, 3
        %s365 = smul.addr %s364, 8
        %s366 = scalar_lea.vmem %s6, %s365
        %s367 = smul.u32 2, %s29
        %p369 = scmp.eq.s32.totalorder %s30, 0
        // Predicated region
        $region49: #{tpu_custom_call.1} parent=43 // pred_check
          %p370 = pneg %p369
        $region50: #{tpu_custom_call.1} parent=43 // pred_check_branch
          %372 = sbr.rel (%p370) target = $region52
        $region51: #{tpu_custom_call.1} parent=43 // pred_region
          %vm373 = vcmask 7168
          %374 = vst.msk [vmem:[#allocation2] sm:$0xff] %vm373, -1e+30
          %375 = vst.msk [vmem:[#allocation2 + $0x8] sm:$0xff] %vm373, -1e+30
          %376 = vst.msk [vmem:[#allocation3] sm:$0xff] %vm373, 0.0
          %377 = vst.msk [vmem:[#allocation3 + $0x8] sm:$0xff] %vm373, 0.0
          %378 = vst.msk [vmem:[#allocation4] sm:$0xff] %vm373, 0.0
          %379 = vst.msk [vmem:[#allocation4 + $0x8] sm:$0xff] %vm373, 0.0
        $region52: #{tpu_custom_call.1} parent=43 // pred_fallthru
          _
        %v380 = vld [vmem:[%s353] sm:$0xf]
        %v381 = vld [vmem:[%s353 + $0x4] sm:$0xf]
        %v382 = vld [vmem:[%s303] sm:$0xff]
        %v383 = vld [vmem:[%s303 + $0x8] sm:$0xff]
        %v384 = vld [vmem:[%s303 + $0x10] sm:$0xff]
        %v385 = vld [vmem:[%s303 + $0x18] sm:$0xff]
        %v386 = vld [vmem:[%s303 + $0x20] sm:$0xff]
        %v387 = vld [vmem:[%s303 + $0x28] sm:$0xff]
        %v388 = vld [vmem:[%s303 + $0x30] sm:$0xff]
        %v389 = vld [vmem:[%s303 + $0x38] sm:$0xff]
        %v392 = vunpack.c.l.b16 %v380
        %v393 = vunpack.c.l.b16 %v381
        %v394 = vpack.c.b16 %v393, %v392
        %v403 = vunpack.c.l.b16 %v382
        %v404 = vunpack.c.h.b16 %v382
        %v405 = vunpack.c.l.b16 %v383
        %v406 = vunpack.c.h.b16 %v383
        %v407 = vunpack.c.l.b16 %v384
        %v408 = vunpack.c.h.b16 %v384
        %v409 = vunpack.c.l.b16 %v385
        %v410 = vunpack.c.h.b16 %v385
        %v411 = vunpack.c.l.b16 %v386
        %v412 = vunpack.c.h.b16 %v386
        %v413 = vunpack.c.l.b16 %v387
        %v414 = vunpack.c.h.b16 %v387
        %v415 = vunpack.c.l.b16 %v388
        %v416 = vunpack.c.h.b16 %v388
        %v417 = vunpack.c.l.b16 %v389
        %v418 = vunpack.c.h.b16 %v389
        %v419 = vpack.c.b16 %v405, %v403
        %v420 = vpack.c.b16 %v406, %v404
        %v421 = vpack.c.b16 %v409, %v407
        %v422 = vpack.c.b16 %v410, %v408
        %v423 = vpack.c.b16 %v413, %v411
        %v424 = vpack.c.b16 %v414, %v412
        %v425 = vpack.c.b16 %v417, %v415
        %v426 = vpack.c.b16 %v418, %v416
        %vm435 = vcmask 523264
        %v437 = vsel %vm435, %v394, 0
        %439 = vmatprep.subr.bf16.mxu0 %v420
        %440 = vmatpush1.bf16.msra.mxu0 %v419
        %441 = vmatprep.subr.bf16.mxu0 %v422
        %442 = vmatpush1.bf16.msra.mxu0 %v421
        %443 = vmatprep.subr.bf16.mxu0 %v424
        %444 = vmatpush1.bf16.msra.mxu0 %v423
        %445 = vmatprep.subr.bf16.mxu0 %v426
        %446 = vmatpush1.bf16.msra.mxu0 %v425
        %447 = vmatprep.subr.bf16.mxu0 0
        %448 = vmatpush1.bf16.msra.mxu0 0
        %449 = vmatprep.subr.bf16.mxu0 0
        %450 = vmatpush1.bf16.msra.mxu0 0
        %451 = vmatprep.subr.bf16.mxu0 0
        %452 = vmatpush1.bf16.msra.mxu0 0
        %453 = vmatprep.subr.bf16.mxu0 0
        %454 = vmatpush1.bf16.msra.mxu0 0
        %455 = vmatprep.subr.bf16.mxu0 0
        %456 = vmatpush1.bf16.msra.mxu0 0
        %457 = vmatprep.subr.bf16.mxu0 0
        %458 = vmatpush1.bf16.msra.mxu0 0
        %459 = vmatprep.subr.bf16.mxu0 0
        %460 = vmatpush1.bf16.msra.mxu0 0
        %461 = vmatprep.subr.bf16.mxu0 0
        %462 = vmatpush1.bf16.msra.mxu0 0
        %463 = vmatprep.subr.bf16.mxu0 0
        %464 = vmatpush1.bf16.msra.mxu0 0
        %465 = vmatprep.subr.bf16.mxu0 0
        %466 = vmatpush1.bf16.msra.mxu0 0
        %467 = vmatprep.subr.bf16.mxu0 0
        %468 = vmatpush1.bf16.msra.mxu0 0
        %469 = vmatprep.subr.bf16.mxu0 0
        %470 = vmatpush1.bf16.msra.mxu0 0
        %471 = vmatprep.mubr.bf16.mxu0 0
        %472 = vmatmul.mubr.bf16.gmra.mrb[0].mxu0 %v437
        %v473 = vpop.f32.mrb[0].mxu0
        %v474 = vadd.f32 0.0, %v473
        %v475 = vpop.f32.mrb[0].mxu0
        %v476 = vadd.f32 0.0, %v475
        %v477 = vpop.f32.mrb[0].mxu0
        %v478 = vadd.f32 0.0, %v477
        %v479 = vpop.f32.mrb[0].mxu0
        %v480 = vadd.f32 0.0, %v479
        %481 = vdwg.mxu0
        %v482 = vlaneseq
        %v483 = vand.u32 %v482, 127
        %v484 = vadd.s32 %v483, 128
        %v485 = vld [vmem:[%s360] sm:$0xff]
        %v486 = vld [vmem:[%s360 + $0x8] sm:$0xff]
        %s487 = smul.u32 %s30, 256
        %v488 = vstv %s487
        %v489 = vsub.s32 %v485, %v488
        %v490 = vsub.s32 %v486, %v488
        %491 = vset.pattern.permute.xlu0 0
        %492 = vperm.xlu0 %491, %v489
        %v493 = vpop.permute.xlu0 %492
        %494 = vset.pattern.permute.xlu0 0
        %495 = vperm.xlu0 %494, %v490
        %v496 = vpop.permute.xlu0 %495
        %vm497 = vcmp.eq.s32.totalorder %v483, %v493
        %vm498 = vcmp.eq.s32.totalorder %v484, %v493
        %vm499 = vcmp.eq.s32.totalorder %v483, %v496
        %vm500 = vcmp.eq.s32.totalorder %v484, %v496
        %v501 = vld [vmem:[#allocation4] sm:$0xff]
        %v502 = vld [vmem:[#allocation4 + $0x8] sm:$0xff]
        %v503 = vsel %vm497, %v474, 0.0
        %v504 = vsel %vm498, %v476, 0.0
        %v505 = vsel %vm499, %v478, 0.0
        %v506 = vsel %vm500, %v480, 0.0
        %v507 = vadd.f32 %v503, %v504
        %508 = vadd.xlane.f32.xlu0 %v507
        %v509 = vpop.xlane.xlu0 %508
        %v510 = vadd.f32 %v505, %v506
        %511 = vadd.xlane.f32.xlu0 %v510
        %v512 = vpop.xlane.xlu0 %511
        %v513 = vadd.f32 %v501, %v509
        %v514 = vadd.f32 %v502, %v512
        %vm515 = vcmask 7168
        %516 = vst.msk [vmem:[#allocation4] sm:$0xff] %vm515, %v513
        %517 = vst.msk [vmem:[#allocation4 + $0x8] sm:$0xff] %vm515, %v514
        %v518 = vsel %vm497, -1e+30, %v474
        %v519 = vsel %vm498, -1e+30, %v476
        %v520 = vsel %vm499, -1e+30, %v478
        %v521 = vsel %vm500, -1e+30, %v480
        %s522 = ssub.s32 600, %s487
        %v523 = vstv %s522
        %vm524 = vcmp.lt.s32.totalorder %v483, %v523
        %vm525 = vcmp.lt.s32.totalorder %v484, %v523
        %v526 = vsel %vm524, 0.0, -1e+09
        %v527 = vsel %vm525, 0.0, -1e+09
        %v528 = vadd.f32 %v518, %v526
        %v529 = vadd.f32 %v519, %v527
        %v530 = vadd.f32 %v520, %v526
        %v531 = vadd.f32 %v521, %v527
        %v532 = vld [vmem:[#allocation2] sm:$0xff]
        %v533 = vld [vmem:[#allocation2 + $0x8] sm:$0xff]
        %v534 = vmax.f32 %v528, %v529
        %535 = vmax.xlane.f32.xlu0 %v534
        %v536 = vpop.xlane.xlu0 %535
        %v537 = vmax.f32 %v530, %v531
        %538 = vmax.xlane.f32.xlu0 %v537
        %v539 = vpop.xlane.xlu0 %538
        %v540 = vmax.f32 %v532, %v536
        %v541 = vmax.f32 %v533, %v539
        %v542 = vld [vmem:[#allocation3] sm:$0xff]
        %v543 = vld [vmem:[#allocation3 + $0x8] sm:$0xff]
        %v544 = vsub.f32 %v532, %v540
        %v545 = vsub.f32 %v533, %v541
        %v546 = vmul.f32 %v544, 1.442695
        %v547 = vpow.pop %v546
        %v548 = vmul.f32 %v545, 1.442695
        %v549 = vpow.pop %v548
        %v550 = vmul.f32 %v542, %v547
        %v551 = vmul.f32 %v543, %v549
        %553 = vset.pattern.permute.xlu0 0
        %554 = vperm.xlu0 %553, %v540
        %v555 = vpop.permute.xlu0 %554
        %558 = vset.pattern.permute.xlu0 0
        %559 = vperm.xlu0 %558, %v541
        %v560 = vpop.permute.xlu0 %559
        %v562 = vsub.f32 %v528, %v555
        %v563 = vsub.f32 %v529, %v555
        %v564 = vsub.f32 %v530, %v560
        %v565 = vsub.f32 %v531, %v560
        %v566 = vmul.f32 %v562, 1.442695
        %v567 = vpow.pop %v566
        %v568 = vmul.f32 %v563, 1.442695
        %v569 = vpow.pop %v568
        %v570 = vmul.f32 %v564, 1.442695
        %v571 = vpow.pop %v570
        %v572 = vmul.f32 %v565, 1.442695
        %v573 = vpow.pop %v572
        %v574 = vadd.f32 %v567, %v569
        %575 = vadd.xlane.f32.xlu0 %v574
        %v576 = vpop.xlane.xlu0 %575
        %v577 = vadd.f32 %v571, %v573
        %578 = vadd.xlane.f32.xlu0 %v577
        %v579 = vpop.xlane.xlu0 %578
        %v580 = vadd.f32 %v550, %v576
        %v581 = vadd.f32 %v551, %v579
        %582 = vst.msk [vmem:[#allocation3] sm:$0xff] %vm515, %v580
        %583 = vst.msk [vmem:[#allocation3 + $0x8] sm:$0xff] %vm515, %v581
        %584 = vst.msk [vmem:[#allocation2] sm:$0xff] %vm515, %v540
        %585 = vst.msk [vmem:[#allocation2 + $0x8] sm:$0xff] %vm515, %v541
        %p586 = scmp.eq.s32.totalorder %s30, 2
        // Predicated region
        $region53: #{tpu_custom_call.1} parent=43 // pred_check
          %p587 = pneg %p586
        $region54: #{tpu_custom_call.1} parent=43 // pred_check_branch
          %589 = sbr.rel (%p587) target = $region56
        $region55: #{tpu_custom_call.1} parent=43 // pred_region
          %v590 = vld [vmem:[#allocation4] sm:$0xff]
          %v591 = vld [vmem:[#allocation4 + $0x8] sm:$0xff]
          %v592 = vld [vmem:[#allocation2] sm:$0xff]
          %v593 = vld [vmem:[#allocation2 + $0x8] sm:$0xff]
          %v594 = vmul.f32 %v590, 0.033333335
          %v595 = vmul.f32 %v591, 0.033333335
          %v596 = vmul.f32 %v594, %v594
          %v597 = vmul.f32 %v595, %v595
          %v598 = vsub.f32 1.0, %v596
          %v599 = vsub.f32 1.0, %v597
          %v600 = vmax.f32 %v598, 0.0
          %v601 = vmax.f32 %v599, 0.0
          %v602 = vmin.f32 %v600, 1.0
          %v603 = vmin.f32 %v601, 1.0
          %v604 = vrsqrt.pop %v602
          %v605 = vmul.f32 %v602, %v604
          %vm606 = vcmp.eq.f32.partialorder %v602, inf
          %v607 = vsel %vm606, %v602, %v605
          %vm608 = vcmp.eq.f32.partialorder %v602, 0.0
          %v609 = vand.u32 %v602, 2147483648
          %v610 = vsel %vm608, %v609, %v607
          %v611 = vrsqrt.pop %v603
          %v612 = vmul.f32 %v603, %v611
          %vm613 = vcmp.eq.f32.partialorder %v603, inf
          %v614 = vsel %vm613, %v603, %v612
          %vm615 = vcmp.eq.f32.partialorder %v603, 0.0
          %v616 = vand.u32 %v603, 2147483648
          %v617 = vsel %vm615, %v616, %v614
          %v618 = vmul.f32 %v594, 0.9800666
          %v619 = vmul.f32 %v595, 0.9800666
          %v620 = vmul.f32 %v610, 0.19866933
          %v621 = vmul.f32 %v617, 0.19866933
          %v622 = vsub.f32 %v618, %v620
          %v623 = vsub.f32 %v619, %v621
          %v624 = vsub.f32 %v594, -0.9800666
          %v625 = vsub.f32 %v595, -0.9800666
          %vm626 = vcmp.gt.f32.partialorder %v624, 0.0
          %vm627 = vcmp.gt.f32.partialorder %v625, 0.0
          %v628 = vsub.f32 %v594, 0.039733864
          %v629 = vsub.f32 %v595, 0.039733864
          %v630 = vsel %vm626, %v622, %v628
          %v631 = vsel %vm627, %v623, %v629
          %v632 = vmul.f32 %v630, 30.0
          %v633 = vmul.f32 %v631, 30.0
          %v634 = vmax.f32 %v592, %v632
          %v635 = vmax.f32 %v593, %v633
          %v636 = vld [vmem:[#allocation3] sm:$0xff]
          %v637 = vld [vmem:[#allocation3 + $0x8] sm:$0xff]
          %v638 = vsub.f32 %v592, %v634
          %v639 = vsub.f32 %v593, %v635
          %v640 = vmul.f32 %v638, 1.442695
          %v641 = vpow.pop %v640
          %v642 = vmul.f32 %v639, 1.442695
          %v643 = vpow.pop %v642
          %v644 = vmul.f32 %v636, %v641
          %v645 = vmul.f32 %v637, %v643
          %v646 = vsub.f32 %v632, %v634
          %v647 = vsub.f32 %v633, %v635
          %v648 = vmul.f32 %v646, 1.442695
          %v649 = vpow.pop %v648
          %v650 = vmul.f32 %v647, 1.442695
          %v651 = vpow.pop %v650
          %v652 = vadd.f32 %v644, %v649
          %v653 = vadd.f32 %v645, %v651
          %v654 = vlog2.pop %v652
          %v655 = vmul.f32 %v654, 0.6931472
          %v656 = vlog2.pop %v653
          %v657 = vmul.f32 %v656, 0.6931472
          %v658 = vadd.f32 %v634, %v655
          %v659 = vadd.f32 %v635, %v657
          %s660 = smul.u32 %s29, 16
          %v661 = vlaneseq
          %v662 = vshrl.u32 %v661, 7
          %v663 = vadd.s32 %v662, 8
          %v664 = vstv %s660
          %v665 = vadd.s32 %v664, %v662
          %v666 = vadd.s32 %v664, %v663
          %vm667 = vcmp.lt.s32.totalorder %v665, 32
          %vm668 = vcmp.lt.s32.totalorder %v666, 32
          %v669 = vsub.f32 %v658, %v632
          %v670 = vsub.f32 %v659, %v633
          %v671 = vsel %vm667, %v669, 0.0
          %v672 = vsel %vm668, %v670, 0.0
          %673 = vst.msk [vmem:[%s366] sm:$0xff] %vm515, %v671
          %674 = vst.msk [vmem:[%s366 + $0x8] sm:$0xff] %vm515, %v672
          %vm675 = vcmp.ge.f32.partialorder %v632, %v592
          %vm676 = vcmp.ge.f32.partialorder %v633, %v593
          %vm677 = vmand %vm667, %vm675
          %vm678 = vmand %vm668, %vm676
          %v679 = vsel %vm677, 1.0, 0.0
          %v680 = vsel %vm678, 1.0, 0.0
          %683 = vrot.lane.b32.xlu0 %v679, 1
          %v684 = vpop.permute.xlu0 %683
          %685 = vrot.lane.b32.xlu0 %v680, 1
          %v686 = vpop.permute.xlu0 %685
          %vm689 = vcmask 15368
          %690 = vst.msk [vmem:[%s366] sm:$0xff] %vm689, %v684
          %691 = vst.msk [vmem:[%s366 + $0x8] sm:$0xff] %vm689, %v686
          %692 = vst [vmem:[%s348] sm:$0xff] 0.0
        $region56: #{tpu_custom_call.1} parent=43 // pred_fallthru
          _
        %p693 = scmp.eq.s32.totalorder %s29, 0
        %p694 = pnand %p586, %p693
        %p695 = pneg %p694
        // Predicated region
        $region57: #{tpu_custom_call.1} parent=43 // pred_check
          _
        $region58: #{tpu_custom_call.1} parent=43 // pred_check_branch
          %697 = sbr.rel (%p694) target = $region60
        $region59: #{tpu_custom_call.1} parent=43 // pred_region
          %v698 = vld [vmem:[%s3] sm:$0xff]
          %v699 = vld [vmem:[%s3 + $0x8] sm:$0xff]
          %v700 = vld [vmem:[%s4] sm:$0xff]
          %v701 = vld [vmem:[%s4 + $0x8] sm:$0xff]
          %v703 = vsel %vm435, %v698, 0
          %v706 = vsel %vm435, %v699, 0
          %v709 = vsel %vm435, %v700, 0
          %v712 = vsel %vm435, %v701, 0
          %714 = vmatprep.subr.mxu0 0.0
          %715 = vmatpush1.xpose.msra.mxu0 %v709
          %716 = vmatprep.subr.mxu0 0.0
          %717 = vmatpush1.xpose.msra.mxu0 %v712
          %718 = vmatprep.subr.mxu0 0.0
          %719 = vmatpush1.xpose.msra.mxu0 0.0
          %720 = vmatprep.subr.mxu0 0.0
          %721 = vmatpush1.xpose.msra.mxu0 0.0
          %722 = vmatprep.subr.mxu0 0.0
          %723 = vmatpush1.xpose.msra.mxu0 0.0
          %724 = vmatprep.subr.mxu0 0.0
          %725 = vmatpush1.xpose.msra.mxu0 0.0
          %726 = vmatprep.subr.mxu0 0.0
          %727 = vmatpush1.xpose.msra.mxu0 0.0
          %728 = vmatprep.subr.mxu0 0.0
          %729 = vmatpush1.xpose.msra.mxu0 0.0
          %730 = vmatprep.subr.mxu0 0.0
          %731 = vmatpush1.xpose.msra.mxu0 0.0
          %732 = vmatprep.subr.mxu0 0.0
          %733 = vmatpush1.xpose.msra.mxu0 0.0
          %734 = vmatprep.subr.mxu0 0.0
          %735 = vmatpush1.xpose.msra.mxu0 0.0
          %736 = vmatprep.subr.mxu0 0.0
          %737 = vmatpush1.xpose.msra.mxu0 0.0
          %738 = vmatprep.subr.mxu0 0.0
          %739 = vmatpush1.xpose.msra.mxu0 0.0
          %740 = vmatprep.subr.mxu0 0.0
          %741 = vmatpush1.xpose.msra.mxu0 0.0
          %742 = vmatprep.subr.mxu0 0.0
          %743 = vmatpush1.xpose.msra.mxu0 0.0
          %744 = vmatprep.subr.mxu0 0.0
          %745 = vmatpush1.xpose.msra.mxu0 0.0
          %746 = vmatprep.subr.mxu0 0.0
          %747 = vmatpush1.xpose.msra.mxu0 0.0
          %748 = vmatprep.subr.mxu0 0.0
          %749 = vmatpush1.xpose.msra.mxu0 0.0
          %750 = vmatprep.subr.mxu0 0.0
          %751 = vmatpush1.xpose.msra.mxu0 0.0
          %752 = vmatprep.subr.mxu0 0.0
          %753 = vmatpush1.xpose.msra.mxu0 0.0
          %754 = vmatprep.subr.mxu0 0.0
          %755 = vmatpush1.xpose.msra.mxu0 0.0
          %756 = vmatprep.subr.mxu0 0.0
          %757 = vmatpush1.xpose.msra.mxu0 0.0
          %758 = vmatprep.subr.mxu0 0.0
          %759 = vmatpush1.xpose.msra.mxu0 0.0
          %760 = vmatprep.subr.mxu0 0.0
          %761 = vmatpush1.xpose.msra.mxu0 0.0
          %762 = vmatprep.subr.mxu0 0.0
          %763 = vmatpush1.xpose.msra.mxu0 0.0
          %764 = vmatprep.subr.mxu0 0.0
          %765 = vmatpush1.xpose.msra.mxu0 0.0
          %766 = vmatprep.subr.mxu0 0.0
          %767 = vmatpush1.xpose.msra.mxu0 0.0
          %768 = vmatprep.subr.mxu0 0.0
          %769 = vmatpush1.xpose.msra.mxu0 0.0
          %770 = vmatprep.subr.mxu0 0.0
          %771 = vmatpush1.xpose.msra.mxu0 0.0
          %772 = vmatprep.subr.mxu0 0.0
          %773 = vmatpush1.xpose.msra.mxu0 0.0
          %774 = vmatprep.subr.mxu0 0.0
          %775 = vmatpush1.xpose.msra.mxu0 0.0
          %776 = vmatprep.subr.mxu0 0.0
          %777 = vmatpush1.xpose.msra.mxu0 0.0
          %778 = vmatprep.mubr.f32.mxu0 0.0
          %779 = vmatmul.mubr.f32.gmra.mrb[0].mxu0 %v703
          %v780 = vpop.f32.mrb[0].mxu0
          %v781 = vadd.f32 0.0, %v780
          %v782 = vpop.f32.mrb[0].mxu0
          %783 = vmatprep.mubr.f32.mxu0 0.0
          %784 = vmatmul.mubr.f32.gmra.mrb[0].mxu0 %v706
          %v785 = vpop.f32.mrb[0].mxu0
          %v786 = vadd.f32 0.0, %v785
          %v787 = vpop.f32.mrb[0].mxu0
          %788 = vdwg.mxu0
          %v789 = vld [vmem:[%s5] sm:$0x1]
          %v791 = vlaneseq
          %v792 = vshrl.u32 %v791, 7
          %v793 = vsub.s32 0, %v792
          %v794 = vrot.slane %v789, %v793
          %795 = vset.pattern.permute.xlu0 0
          %796 = vperm.xlu0 %795, %v794
          %v797 = vpop.permute.xlu0 %796
          %v799 = vmul.f32 %v781, %v797
          %v800 = vmul.f32 %v786, %v797
          %801 = vset.pattern.permute.xlu0 1
          %802 = vperm.xlu0 %801, %v794
          %v803 = vpop.permute.xlu0 %802
          %v805 = vadd.f32 %v799, %v803
          %v806 = vadd.f32 %v800, %v803
          %v807 = vlaneseq
          %v808 = vshrl.u32 %v807, 7
          %v809 = vadd.s32 %v808, 8
          %vm810 = vcmp.lt.s32.totalorder %v808, 16
          %vm811 = vcmp.lt.s32.totalorder %v809, 16
          %vm812 = vcmp.lt.s32.totalorder %v483, 16
          %v813 = vsel %vm812, %v805, -1e+30
          %v814 = vsel %vm812, %v806, -1e+30
          %v815 = vsel %vm810, %v805, -1e+30
          %v816 = vsel %vm811, %v806, -1e+30
          %vm817 = vcmask 130048
          %v818 = vsel %vm817, %v813, -inf
          %819 = vmax.xlane.f32.xlu0 %v818
          %v820 = vpop.xlane.xlu0 %819
          %v821 = vsel %vm817, %v814, -inf
          %822 = vmax.xlane.f32.xlu0 %v821
          %v823 = vpop.xlane.xlu0 %822
          %v824 = vsub.f32 %v813, %v820
          %v825 = vsub.f32 %v814, %v823
          %v826 = vmul.f32 %v824, 1.442695
          %v827 = vpow.pop %v826
          %v828 = vmul.f32 %v825, 1.442695
          %v829 = vpow.pop %v828
          %v830 = vsel %vm817, %v827, 0.0
          %831 = vadd.xlane.f32.xlu0 %v830
          %v832 = vpop.xlane.xlu0 %831
          %v833 = vsel %vm817, %v829, 0.0
          %834 = vadd.xlane.f32.xlu0 %v833
          %v835 = vpop.xlane.xlu0 %834
          %v836 = vlog2.pop %v832
          %v837 = vmul.f32 %v836, 0.6931472
          %v838 = vlog2.pop %v835
          %v839 = vmul.f32 %v838, 0.6931472
          %v840 = vadd.f32 %v820, %v837
          %v841 = vadd.f32 %v823, %v839
          %v842 = vsel %vm810, %v840, 0.0
          %v843 = vsel %vm811, %v841, 0.0
          %v844 = vadd.f32 %v842, %v843
          %v845 = vrot.slane %v844, 4
          %v846 = vadd.f32 %v844, %v845
          %v847 = vrot.slane %v846, 2
          %v848 = vadd.f32 %v846, %v847
          %v849 = vrot.slane %v848, 1
          %v850 = vadd.f32 %v848, %v849
          %v851 = vsel %vm817, %v815, -inf
          %v852 = vsel %vm817, %v816, -inf
          %v853 = vmax.f32 %v851, %v852
          %v854 = vrot.slane %v853, 4
          %v855 = vmax.f32 %v853, %v854
          %v856 = vrot.slane %v855, 2
          %v857 = vmax.f32 %v855, %v856
          %v858 = vrot.slane %v857, 1
          %v859 = vmax.f32 %v857, %v858
          %v860 = vsub.f32 %v815, %v859
          %v861 = vsub.f32 %v816, %v859
          %v862 = vmul.f32 %v860, 1.442695
          %v863 = vpow.pop %v862
          %v864 = vmul.f32 %v861, 1.442695
          %v865 = vpow.pop %v864
          %v866 = vsel %vm817, %v863, 0.0
          %v867 = vsel %vm817, %v865, 0.0
          %v868 = vadd.f32 %v866, %v867
          %v869 = vrot.slane %v868, 4
          %v870 = vadd.f32 %v868, %v869
          %v871 = vrot.slane %v870, 2
          %v872 = vadd.f32 %v870, %v871
          %v873 = vrot.slane %v872, 1
          %v874 = vadd.f32 %v872, %v873
          %v875 = vlog2.pop %v874
          %v876 = vmul.f32 %v875, 0.6931472
          %v877 = vadd.f32 %v859, %v876
          %v878 = vsel %vm812, %v877, 0.0
          %v879 = vsel %vm817, %v878, 0.0
          %880 = vadd.xlane.f32.xlu0 %v879
          %v881 = vpop.xlane.xlu0 %880
          %vm882 = vcmp.eq.s32.totalorder %v808, %v483
          %vm883 = vcmp.eq.s32.totalorder %v809, %v483
          %vm884 = vmand %vm882, %vm810
          %vm885 = vmand %vm883, %vm811
          %vm886 = vmand %vm884, %vm812
          %vm887 = vmand %vm885, %vm812
          %v888 = vsel %vm886, %v805, 0.0
          %v889 = vsel %vm887, %v806, 0.0
          %v890 = vsel %vm817, %v888, 0.0
          %891 = vadd.xlane.f32.xlu0 %v890
          %v892 = vpop.xlane.xlu0 %891
          %v893 = vsel %vm817, %v889, 0.0
          %894 = vadd.xlane.f32.xlu0 %v893
          %v895 = vpop.xlane.xlu0 %894
          %v896 = vadd.f32 %v892, %v895
          %v897 = vrot.slane %v896, 4
          %v898 = vadd.f32 %v896, %v897
          %v899 = vrot.slane %v898, 2
          %v900 = vadd.f32 %v898, %v899
          %v901 = vrot.slane %v900, 1
          %v902 = vadd.f32 %v900, %v901
          %v903 = vsub.f32 %v850, %v902
          %v904 = vsub.f32 %v881, %v902
          %v905 = vadd.f32 %v903, %v904
          %v906 = vmul.f32 %v905, 0.5
          %v907 = vrcp.pop 16.0
          %v908 = vmul.f32 %v906, %v907
          %909 = vst [vmem:[%s348] sm:$0xff] %v908
        $region60: #{tpu_custom_call.1} parent=43 // pred_fallthru
          _
        %s910 = smul.u32 2, %s29
        %p911 = scmp.lt.s32.totalorder %s910, 3
        %s912 = scalar_select %p911, %s910, 3
        %s913 = smul.addr %s912, 8
        %s914 = scalar_lea.vmem %s6, %s913
        %s915 = sand.u32 %s212, 1
        %s916 = scalar_lea.sflag [#allocation7], %s915
        %s917 = sand.u32 %s212, 1
        %s918 = smul.addr %s917, 8
        %s919 = scalar_lea.vmem [#allocation8], %s918
        // Predicated region
        $region61: #{tpu_custom_call.1} parent=43 // pred_check
          %p920 = pneg %p196
        $region62: #{tpu_custom_call.1} parent=43 // pred_check_branch
          %922 = sbr.rel (%p920) target = $region64
        $region63: #{tpu_custom_call.1} parent=43 // pred_region
          %s923 = smul.u32 2, %s29
        $region64: #{tpu_custom_call.1} parent=43 // pred_fallthru
          _
        // Predicated region
        $region65: #{tpu_custom_call.1} parent=43 // pred_check
          %p924 = pneg %p222
        $region66: #{tpu_custom_call.1} parent=43 // pred_check_branch
          %926 = sbr.rel (%p924) target = $region68
        $region67: #{tpu_custom_call.1} parent=43 // pred_region
          %s928 = ssub.s32 128, 128
          %929 = vsyncadd %s916, %s928
          %s930 = smul.addr %s29, 128
          %s931 = scalar_lea.hbm %s7, %s930
          %s933 = sshll.u32 %s919, 4
          %s934 = int_to_ptr.vmem [resolvable:$true] %s933
          %936 = dma.vmem_to_hbm [thread:$0]  %s934, 128, %s931, %s916
        $region68: #{tpu_custom_call.1} parent=43 // pred_fallthru
          _
      $region44: #{tpu_custom_call.1} parent=5 // pred_fallthru
        _
      %p937 = scmp.le.s32.totalorder 2, %s20
      // Predicated region
      $region69: #{tpu_custom_call.1} parent=5 // pred_check
        %p938 = pneg %p937
      $region70: #{tpu_custom_call.1} parent=5 // pred_check_branch
        %940 = sbr.rel (%p938) target = $region72
      $region71: #{tpu_custom_call.1} parent=5 // pred_region
        %s941 = ssub.s32 %s20, 2
        // Predicated region
        $region73: #{tpu_custom_call.1} parent=71 // pred_check
          %p942 = pneg %p202
        $region74: #{tpu_custom_call.1} parent=71 // pred_check_branch
          %944 = sbr.rel (%p942) target = $region76
        $region75: #{tpu_custom_call.1} parent=71 // pred_region
          %s945 = smul.u32 2, %s31
          %p946 = scmp.lt.s32.totalorder %s945, 3
          %s947 = scalar_select %p946, %s945, 3
          %s948 = smul.addr %s947, 8
          %s949 = scalar_lea.vmem %s6, %s948
        $region76: #{tpu_custom_call.1} parent=71 // pred_fallthru
          _
        // Predicated region
        $region77: #{tpu_custom_call.1} parent=71 // pred_check
          %p950 = pneg %p228
        $region78: #{tpu_custom_call.1} parent=71 // pred_check_branch
          %952 = sbr.rel (%p950) target = $region80
        $region79: #{tpu_custom_call.1} parent=71 // pred_region
          %s953 = sand.u32 %s213, 1
          %s954 = scalar_lea.sflag [#allocation7], %s953
          %s955 = sand.u32 %s213, 1
          %s956 = smul.addr %s955, 8
          %s957 = scalar_lea.vmem [#allocation8], %s956
          %958 = dma.done %s954, 128
        $region80: #{tpu_custom_call.1} parent=71 // pred_fallthru
          _
      $region72: #{tpu_custom_call.1} parent=5 // pred_fallthru
        _
    $region6: #{tpu_custom_call.1} parent=1 // loop_footer
      %s24 = sadd.s32 1, %s20
    $region7: #{tpu_custom_call.1} parent=1 // loop_footer_branch
      %19 = sbr.rel target = $region3
    $region8: #{tpu_custom_call.1} parent=1 // loop_exit
      _
    %959 = vsyncpa [#allocation6], 1
    %s960 = scalar_lea.sflag [#allocation6], 1
    %961 = vsyncpa %s960, 1
    %962 = vsyncpa [#allocation7], 1
    %s963 = scalar_lea.sflag [#allocation7], 1
    %964 = vsyncpa %s963, 1

</llo_original>
